<compile_context>
chip_gen: v6e
topology: v6e:2x2x1
jax: 0.10.0
libtpu: 0.0.40
codegen_flags: <defaults>
</compile_context>

<pallas_src>
import functools

import numpy as np
import jax
import jax.numpy as jnp
from jax.experimental import pallas as pl
from jax.experimental.pallas import tpu as pltpu

# ----------------------------- problem sizes --------------------------------
B = 2                 # batch
C = 16                # feature_dim at the middle layer (divisible by reduction)
H = W = 16            # spatial size of the middle-layer feature map
HW = H * W            # 256 lanes = 2 * 128  (lane aligned)
RED = 8               # ATTENTION_REDUCTION_RATIO
CR = C // RED         # squeeze width of the channel attention
HIDDEN = 32           # classifier hidden width (scaled-down stand-in for 1024)
NUM_CLASSES = 10
K_DOG = 5             # LATERAL_INHIBITION_KERNEL_SIZE
K_SP = 7              # spatial-attention conv kernel
INHIB_STRENGTH = 0.3


# --------------------- deterministic parameter construction ------------------
def make_dog_kernel(k=K_DOG, strength=INHIB_STRENGTH):
    """Normalized 2-D difference-of-Gaussians kernel (matches the PyTorch init)."""
    center_sigma = k / 6.0
    surround_sigma = k / 3.0
    g = np.linspace(-(k // 2), k // 2, k)
    xx, yy = np.meshgrid(g, g, indexing="ij")
    dist = xx ** 2 + yy ** 2
    center = np.exp(-dist / (2 * center_sigma ** 2))
    surround = np.exp(-dist / (2 * surround_sigma ** 2))
    dog = center - strength * surround
    dog = dog / np.abs(dog).sum()
    return dog.astype(np.float32)


def make_conv_operator(kernel2d, h=H, w=W):
    """Dense 'same'-zero-padded conv operator D with out_flat = in_flat @ D.

    D[p, q] holds the kernel tap linking input pixel p=(pi,pj) to output pixel
    q=(i,j); out-of-bounds taps are simply absent (zero padding baked in).
    """
    k = kernel2d.shape[0]
    r = k // 2
    D = np.zeros((h * w, h * w), np.float32)
    for i in range(h):
        for j in range(w):
            q = i * w + j
            for di in range(k):
                for dj in range(k):
                    pi, pj = i + di - r, j + dj - r
                    if 0 <= pi < h and 0 <= pj < w:
                        D[pi * w + pj, q] += kernel2d[di, dj]
    return D


def make_params():
    key = jax.random.PRNGKey(0)
    ks = jax.random.split(key, 10)
    p = {
        # channel-attention 1x1 convs (stored pre-transposed for row-vector matmul)
        "w1t": jax.random.normal(ks[0], (C, CR), jnp.float32) * 0.1,
        "b1":  jax.random.normal(ks[1], (1, CR), jnp.float32) * 0.1,
        "w2t": jax.random.normal(ks[2], (CR, C), jnp.float32) * 0.1,
        "b2":  jax.random.normal(ks[3], (1, C), jnp.float32) * 0.1,
        # classifier (Linear -> Hardswish -> [Dropout=id] -> Linear)
        "wc1": jax.random.normal(ks[4], (C, HIDDEN), jnp.float32) * 0.1,
        "bc1": jax.random.normal(ks[5], (1, HIDDEN), jnp.float32) * 0.1,
        "wc2": jax.random.normal(ks[6], (HIDDEN, NUM_CLASSES), jnp.float32) * 0.1,
        "bc2": jax.random.normal(ks[7], (1, NUM_CLASSES), jnp.float32) * 0.1,
    }
    dog2d = make_dog_kernel()
    wsp = (np.asarray(jax.random.normal(ks[8], (2, K_SP, K_SP))) * 0.1
           ).astype(np.float32)                         # [2, 7, 7] spatial conv weights
    consts = {
        "dog": dog2d,                                   # reference only
        "wsp": wsp,                                     # reference only
        "bsp": 0.05,                                    # spatial conv bias
        "alpha": 1.0,                                   # LateralInhibition.alpha
        "gamma": 1.0,                                   # BiologicalAttention.gamma
        "mixing": 0.5,                                  # BioInspiredBlock.mixing
        "bn_scale": 1.0 / np.sqrt(1.0 + 1e-5),          # BN eval: 1/sqrt(var+eps)
        "bn_shift": 0.0,
        # Dense conv operators (kernel inputs; ~256 KiB f32 each).
        "dog_op":  jnp.asarray(make_conv_operator(dog2d)),
        "wavg_op": jnp.asarray(make_conv_operator(wsp[0])),
        "wmax_op": jnp.asarray(make_conv_operator(wsp[1])),
    }
    return p, consts


# --------------------------------- kernel ------------------------------------
def fused_bio_cnn_kernel(x_ref, dog_op_ref, wavg_ref, wmax_ref,
                         w1t_ref, b1_ref, w2t_ref, b2_ref,
                         wc1_ref, bc1_ref, wc2_ref, bc2_ref, o_ref, *,
                         bsp, alpha, gamma, mix_sig, bn_scale, bn_shift):
    """Fused bio block + avgpool + classifier on the lane-dense [B, C, HW] frame."""
    x = x_ref[...]                                           # [B, C, HW]

    # ---- LateralInhibition: 5x5 depthwise DoG conv as one MXU matmul ---------
    x2d = x.reshape(B * C, HW)                               # free leading-dim merge
    inhib = jnp.dot(x2d, dog_op_ref[...],
                    preferred_element_type=jnp.float32)      # [B*C, HW]
    inhib_out = x + alpha * inhib.reshape(B, C, HW)

    # ---- BiologicalAttention: channel attention (squeeze-excite, 1x1 convs) --
    cm = jnp.sum(x, axis=2) * (1.0 / HW)                     # [B, C]
    hid = jnp.maximum(
        jnp.dot(cm, w1t_ref[...], preferred_element_type=jnp.float32) + b1_ref[...],
        0.0)
    ca = jax.nn.sigmoid(
        jnp.dot(hid, w2t_ref[...], preferred_element_type=jnp.float32) + b2_ref[...])
    fr = x * ca[:, :, None]                                  # lane-broadcast channel scale

    # ---- spatial attention: avg/max maps -> 7x7 conv (MXU) -> BN -> sigmoid --
    avg_f = jnp.sum(x, axis=1) * (1.0 / C)                   # [B, HW]
    max_f = jnp.max(x, axis=1)                               # [B, HW]
    sp = (jnp.dot(avg_f, wavg_ref[...], preferred_element_type=jnp.float32)
          + jnp.dot(max_f, wmax_ref[...], preferred_element_type=jnp.float32)
          + bsp)                                             # [B, HW]
    sp = jax.nn.sigmoid(sp * bn_scale + bn_shift)            # BatchNorm2d(1) eval + sigmoid
    attn_out = x + gamma * (fr * sp[:, None, :])             # sublane-broadcast spatial map

    # ---- BioInspiredBlock mixing + fused AdaptiveAvgPool2d(1) + classifier ---
    y = mix_sig * attn_out + (1.0 - mix_sig) * inhib_out
    pooled = jnp.sum(y, axis=2) * (1.0 / HW)                 # [B, C]
    hdn = jnp.dot(pooled, wc1_ref[...],
                  preferred_element_type=jnp.float32) + bc1_ref[...]
    hdn = hdn * jnp.clip(hdn + 3.0, 0.0, 6.0) * (1.0 / 6.0)  # Hardswish
    o_ref[...] = jnp.dot(hdn, wc2_ref[...],
                         preferred_element_type=jnp.float32) + bc2_ref[...]


# --------------------------------- wrapper -----------------------------------
def bio_cnn_forward(x_nchw, params, consts):
    b, c, h, w = x_nchw.shape
    # Contiguous reshape only (metadata-level in XLA): fold (H, W) onto lanes.
    x2 = x_nchw.astype(jnp.float32).reshape(b, c, h * w)     # [B, C, HW]

    kern = functools.partial(
        fused_bio_cnn_kernel,
        bsp=float(consts["bsp"]),
        alpha=float(consts["alpha"]),
        gamma=float(consts["gamma"]),
        mix_sig=float(1.0 / (1.0 + np.exp(-consts["mixing"]))),
        bn_scale=float(consts["bn_scale"]),
        bn_shift=float(consts["bn_shift"]),
    )
    vmem = pl.BlockSpec(memory_space=pltpu.MemorySpace.VMEM)
    return pl.pallas_call(
        kern,
        out_shape=jax.ShapeDtypeStruct((b, NUM_CLASSES), jnp.float32),
        in_specs=[vmem] * 12,
        out_specs=vmem,
    )(x2, consts["dog_op"], consts["wavg_op"], consts["wmax_op"],
      params["w1t"], params["b1"], params["w2t"], params["b2"],
      params["wc1"], params["bc1"], params["wc2"], params["bc2"])


# -------------------------- pure-JAX reference -------------------------------
def reference_forward(x_nchw, p, c_):
    x = jnp.transpose(x_nchw, (0, 2, 3, 1)).astype(jnp.float32)   # [B,H,W,C]
    _, h, w, _ = x.shape
    dog = jnp.asarray(c_["dog"])
    xp = jnp.pad(x, ((0, 0), (2, 2), (2, 2), (0, 0)))
    inhib = sum(dog[di, dj] * xp[:, di:di + h, dj:dj + w, :]
                for di in range(K_DOG) for dj in range(K_DOG))
    inhib_out = x + c_["alpha"] * inhib

    cm = jnp.mean(x, axis=(1, 2))                                  # [B, C]
    hid = jax.nn.relu(cm @ p["w1t"] + p["b1"])
    ca = jax.nn.sigmoid(hid @ p["w2t"] + p["b2"])                  # [B, C]
    fr = x * ca[:, None, None, :]

    avg_c = jnp.mean(x, axis=3, keepdims=True)
    max_c = jnp.max(x, axis=3, keepdims=True)
    ap = jnp.pad(avg_c, ((0, 0), (3, 3), (3, 3), (0, 0)))
    mp = jnp.pad(max_c, ((0, 0), (3, 3), (3, 3), (0, 0)))
    wa = jnp.asarray(c_["wsp"][0])
    wm = jnp.asarray(c_["wsp"][1])
    sp = c_["bsp"] + sum(wa[di, dj] * ap[:, di:di + h, dj:dj + w, :]
                         + wm[di, dj] * mp[:, di:di + h, dj:dj + w, :]
                         for di in range(K_SP) for dj in range(K_SP))
    sp = jax.nn.sigmoid(sp * c_["bn_scale"] + c_["bn_shift"])
    attn_out = x + c_["gamma"] * fr * sp

    mix = jax.nn.sigmoid(jnp.float32(c_["mixing"]))
    y = mix * attn_out + (1.0 - mix) * inhib_out

    pooled = jnp.mean(y, axis=(1, 2))
    hdn = pooled @ p["wc1"] + p["bc1"]
    hdn = hdn * jnp.clip(hdn + 3.0, 0.0, 6.0) / 6.0
    return hdn @ p["wc2"] + p["bc2"]


# ----------------------------------- main -------------------------------------
if __name__ == "__main__":
    params, consts = make_params()

    # x: middle-layer feature map, PyTorch NCHW layout [B, C, H, W]
    x = jax.random.normal(jax.random.PRNGKey(0), (B, C, H, W), jnp.float32)

    logits = jax.block_until_ready(bio_cnn_forward(x, params, consts))
    ref = jax.block_until_ready(reference_forward(x, params, consts))

    np.testing.assert_allclose(np.asarray(logits), np.asarray(ref),
                               rtol=2e-2, atol=2e-2)
    print("KERNEL_OK")
</pallas_src>

<mosaic_0001>
module attributes {stable_mosaic.version = 11 : i64} {
  func.func @fused_bio_cnn_kernel(%arg0: memref<2x16x256xf32, #tpu.memory_space<vmem>>, %arg1: memref<256x256xf32, #tpu.memory_space<vmem>>, %arg2: memref<256x256xf32, #tpu.memory_space<vmem>>, %arg3: memref<256x256xf32, #tpu.memory_space<vmem>>, %arg4: memref<16x2xf32, #tpu.memory_space<vmem>>, %arg5: memref<1x2xf32, #tpu.memory_space<vmem>>, %arg6: memref<2x16xf32, #tpu.memory_space<vmem>>, %arg7: memref<1x16xf32, #tpu.memory_space<vmem>>, %arg8: memref<16x32xf32, #tpu.memory_space<vmem>>, %arg9: memref<1x32xf32, #tpu.memory_space<vmem>>, %arg10: memref<32x10xf32, #tpu.memory_space<vmem>>, %arg11: memref<1x10xf32, #tpu.memory_space<vmem>>, %arg12: memref<2x10xf32, #tpu.memory_space<vmem>>) attributes {dimension_semantics = [], scalar_prefetch = 0 : i64, scratch_operands = 0 : i64, tpu.core_type = #tpu.core_type<tc>} {
    %c0 = arith.constant 0 : index
    %c0_0 = arith.constant 0 : index
    %c0_1 = arith.constant 0 : index
    %0 = vector.load %arg0[%c0, %c0_0, %c0_1] : memref<2x16x256xf32, #tpu.memory_space<vmem>>, vector<2x16x256xf32>
    %1 = vector.shape_cast %0 : vector<2x16x256xf32> to vector<32x256xf32>
    %c0_2 = arith.constant 0 : index
    %c0_3 = arith.constant 0 : index
    %2 = vector.load %arg1[%c0_2, %c0_3] : memref<256x256xf32, #tpu.memory_space<vmem>>, vector<256x256xf32>
    %cst = arith.constant dense<0.000000e+00> : vector<32x256xf32>
    %3 = tpu.matmul %1, %2, %cst {dimension_numbers = #tpu.dot_dimension_numbers<[1], [0], [0], [1], [0, 0, 1, 1], [], []>} : vector<32x256xf32>, vector<256x256xf32>, vector<32x256xf32> -> vector<32x256xf32>
    %4 = vector.shape_cast %3 : vector<32x256xf32> to vector<2x16x256xf32>
    %cst_4 = arith.constant 1.000000e+00 : f32
    %5 = vector.broadcast %cst_4 : f32 to vector<2x16x256xf32>
    %6 = arith.mulf %5, %4 : vector<2x16x256xf32>
    %7 = arith.addf %0, %6 : vector<2x16x256xf32>
    %cst_5 = arith.constant dense<0.000000e+00> : vector<2x16xf32>
    %8 = vector.multi_reduction <add>, %0, %cst_5 [2] : vector<2x16x256xf32> to vector<2x16xf32>
    %cst_6 = arith.constant 3.906250e-03 : f32
    %9 = vector.broadcast %cst_6 : f32 to vector<2x16xf32>
    %10 = arith.mulf %8, %9 : vector<2x16xf32>
    %c0_7 = arith.constant 0 : index
    %c0_8 = arith.constant 0 : index
    %11 = vector.load %arg4[%c0_7, %c0_8] : memref<16x2xf32, #tpu.memory_space<vmem>>, vector<16x2xf32>
    %cst_9 = arith.constant dense<0.000000e+00> : vector<2x2xf32>
    %12 = tpu.matmul %10, %11, %cst_9 {dimension_numbers = #tpu.dot_dimension_numbers<[1], [0], [0], [1], [0, 0, 1, 1], [], []>} : vector<2x16xf32>, vector<16x2xf32>, vector<2x2xf32> -> vector<2x2xf32>
    %c0_10 = arith.constant 0 : index
    %c0_11 = arith.constant 0 : index
    %13 = vector.load %arg5[%c0_10, %c0_11] : memref<1x2xf32, #tpu.memory_space<vmem>>, vector<1x2xf32>
    %14 = vector.broadcast %13 : vector<1x2xf32> to vector<2x2xf32>
    %15 = arith.addf %12, %14 : vector<2x2xf32>
    %cst_12 = arith.constant 0.000000e+00 : f32
    %16 = vector.broadcast %cst_12 : f32 to vector<2x2xf32>
    %17 = arith.maximumf %15, %16 : vector<2x2xf32>
    %c0_13 = arith.constant 0 : index
    %c0_14 = arith.constant 0 : index
    %18 = vector.load %arg6[%c0_13, %c0_14] : memref<2x16xf32, #tpu.memory_space<vmem>>, vector<2x16xf32>
    %cst_15 = arith.constant dense<0.000000e+00> : vector<2x16xf32>
    %19 = tpu.matmul %17, %18, %cst_15 {dimension_numbers = #tpu.dot_dimension_numbers<[1], [0], [0], [1], [0, 0, 1, 1], [], []>} : vector<2x2xf32>, vector<2x16xf32>, vector<2x16xf32> -> vector<2x16xf32>
    %c0_16 = arith.constant 0 : index
    %c0_17 = arith.constant 0 : index
    %20 = vector.load %arg7[%c0_16, %c0_17] : memref<1x16xf32, #tpu.memory_space<vmem>>, vector<1x16xf32>
    %21 = vector.broadcast %20 : vector<1x16xf32> to vector<2x16xf32>
    %22 = arith.addf %19, %21 : vector<2x16xf32>
    %23 = arith.negf %22 : vector<2x16xf32>
    %24 = math.exp %23 : vector<2x16xf32>
    %cst_18 = arith.constant 1.000000e+00 : f32
    %25 = vector.broadcast %cst_18 : f32 to vector<2x16xf32>
    %26 = arith.addf %25, %24 : vector<2x16xf32>
    %27 = arith.divf %25, %26 : vector<2x16xf32>
    %28 = vector.shape_cast %27 : vector<2x16xf32> to vector<2x16x1xf32>
    %29 = vector.broadcast %28 : vector<2x16x1xf32> to vector<2x16x256xf32>
    %30 = arith.mulf %0, %29 : vector<2x16x256xf32>
    %cst_19 = arith.constant dense<0.000000e+00> : vector<2x256xf32>
    %31 = vector.multi_reduction <add>, %0, %cst_19 [1] : vector<2x16x256xf32> to vector<2x256xf32>
    %cst_20 = arith.constant 6.250000e-02 : f32
    %32 = vector.broadcast %cst_20 : f32 to vector<2x256xf32>
    %33 = arith.mulf %31, %32 : vector<2x256xf32>
    %cst_21 = arith.constant dense<0xFF800000> : vector<2x256xf32>
    %34 = vector.multi_reduction <maximumf>, %0, %cst_21 [1] : vector<2x16x256xf32> to vector<2x256xf32>
    %c0_22 = arith.constant 0 : index
    %c0_23 = arith.constant 0 : index
    %35 = vector.load %arg2[%c0_22, %c0_23] : memref<256x256xf32, #tpu.memory_space<vmem>>, vector<256x256xf32>
    %cst_24 = arith.constant dense<0.000000e+00> : vector<2x256xf32>
    %36 = tpu.matmul %33, %35, %cst_24 {dimension_numbers = #tpu.dot_dimension_numbers<[1], [0], [0], [1], [0, 0, 1, 1], [], []>} : vector<2x256xf32>, vector<256x256xf32>, vector<2x256xf32> -> vector<2x256xf32>
    %c0_25 = arith.constant 0 : index
    %c0_26 = arith.constant 0 : index
    %37 = vector.load %arg3[%c0_25, %c0_26] : memref<256x256xf32, #tpu.memory_space<vmem>>, vector<256x256xf32>
    %cst_27 = arith.constant dense<0.000000e+00> : vector<2x256xf32>
    %38 = tpu.matmul %34, %37, %cst_27 {dimension_numbers = #tpu.dot_dimension_numbers<[1], [0], [0], [1], [0, 0, 1, 1], [], []>} : vector<2x256xf32>, vector<256x256xf32>, vector<2x256xf32> -> vector<2x256xf32>
    %39 = arith.addf %36, %38 : vector<2x256xf32>
    %cst_28 = arith.constant 5.000000e-02 : f32
    %40 = vector.broadcast %cst_28 : f32 to vector<2x256xf32>
    %41 = arith.addf %39, %40 : vector<2x256xf32>
    %cst_29 = arith.constant 0.999994993 : f32
    %42 = vector.broadcast %cst_29 : f32 to vector<2x256xf32>
    %43 = arith.mulf %41, %42 : vector<2x256xf32>
    %cst_30 = arith.constant 0.000000e+00 : f32
    %44 = vector.broadcast %cst_30 : f32 to vector<2x256xf32>
    %45 = arith.addf %43, %44 : vector<2x256xf32>
    %46 = arith.negf %45 : vector<2x256xf32>
    %47 = math.exp %46 : vector<2x256xf32>
    %cst_31 = arith.constant 1.000000e+00 : f32
    %48 = vector.broadcast %cst_31 : f32 to vector<2x256xf32>
    %49 = arith.addf %48, %47 : vector<2x256xf32>
    %50 = arith.divf %48, %49 : vector<2x256xf32>
    %51 = vector.shape_cast %50 : vector<2x256xf32> to vector<2x1x256xf32>
    %52 = vector.broadcast %51 : vector<2x1x256xf32> to vector<2x16x256xf32>
    %53 = arith.mulf %30, %52 : vector<2x16x256xf32>
    %cst_32 = arith.constant 1.000000e+00 : f32
    %54 = vector.broadcast %cst_32 : f32 to vector<2x16x256xf32>
    %55 = arith.mulf %54, %53 : vector<2x16x256xf32>
    %56 = arith.addf %0, %55 : vector<2x16x256xf32>
    %cst_33 = arith.constant 0.622459352 : f32
    %57 = vector.broadcast %cst_33 : f32 to vector<2x16x256xf32>
    %58 = arith.mulf %57, %56 : vector<2x16x256xf32>
    %cst_34 = arith.constant 0.377540678 : f32
    %59 = vector.broadcast %cst_34 : f32 to vector<2x16x256xf32>
    %60 = arith.mulf %59, %7 : vector<2x16x256xf32>
    %61 = arith.addf %58, %60 : vector<2x16x256xf32>
    %cst_35 = arith.constant dense<0.000000e+00> : vector<2x16xf32>
    %62 = vector.multi_reduction <add>, %61, %cst_35 [2] : vector<2x16x256xf32> to vector<2x16xf32>
    %cst_36 = arith.constant 3.906250e-03 : f32
    %63 = vector.broadcast %cst_36 : f32 to vector<2x16xf32>
    %64 = arith.mulf %62, %63 : vector<2x16xf32>
    %c0_37 = arith.constant 0 : index
    %c0_38 = arith.constant 0 : index
    %65 = vector.load %arg8[%c0_37, %c0_38] : memref<16x32xf32, #tpu.memory_space<vmem>>, vector<16x32xf32>
    %cst_39 = arith.constant dense<0.000000e+00> : vector<2x32xf32>
    %66 = tpu.matmul %64, %65, %cst_39 {dimension_numbers = #tpu.dot_dimension_numbers<[1], [0], [0], [1], [0, 0, 1, 1], [], []>} : vector<2x16xf32>, vector<16x32xf32>, vector<2x32xf32> -> vector<2x32xf32>
    %c0_40 = arith.constant 0 : index
    %c0_41 = arith.constant 0 : index
    %67 = vector.load %arg9[%c0_40, %c0_41] : memref<1x32xf32, #tpu.memory_space<vmem>>, vector<1x32xf32>
    %68 = vector.broadcast %67 : vector<1x32xf32> to vector<2x32xf32>
    %69 = arith.addf %66, %68 : vector<2x32xf32>
    %cst_42 = arith.constant 3.000000e+00 : f32
    %70 = vector.broadcast %cst_42 : f32 to vector<2x32xf32>
    %71 = arith.addf %69, %70 : vector<2x32xf32>
    %cst_43 = arith.constant 0.000000e+00 : f32
    %cst_44 = arith.constant 6.000000e+00 : f32
    %72 = vector.broadcast %cst_43 : f32 to vector<2x32xf32>
    %73 = arith.maximumf %72, %71 : vector<2x32xf32>
    %74 = vector.broadcast %cst_44 : f32 to vector<2x32xf32>
    %75 = arith.minimumf %74, %73 : vector<2x32xf32>
    %76 = arith.mulf %69, %75 : vector<2x32xf32>
    %cst_45 = arith.constant 0.166666672 : f32
    %77 = vector.broadcast %cst_45 : f32 to vector<2x32xf32>
    %78 = arith.mulf %76, %77 : vector<2x32xf32>
    %c0_46 = arith.constant 0 : index
    %c0_47 = arith.constant 0 : index
    %79 = vector.load %arg10[%c0_46, %c0_47] : memref<32x10xf32, #tpu.memory_space<vmem>>, vector<32x10xf32>
    %cst_48 = arith.constant dense<0.000000e+00> : vector<2x10xf32>
    %80 = tpu.matmul %78, %79, %cst_48 {dimension_numbers = #tpu.dot_dimension_numbers<[1], [0], [0], [1], [0, 0, 1, 1], [], []>} : vector<2x32xf32>, vector<32x10xf32>, vector<2x10xf32> -> vector<2x10xf32>
    %c0_49 = arith.constant 0 : index
    %c0_50 = arith.constant 0 : index
    %81 = vector.load %arg11[%c0_49, %c0_50] : memref<1x10xf32, #tpu.memory_space<vmem>>, vector<1x10xf32>
    %82 = vector.broadcast %81 : vector<1x10xf32> to vector<2x10xf32>
    %83 = arith.addf %80, %82 : vector<2x10xf32>
    %c0_51 = arith.constant 0 : index
    %c0_52 = arith.constant 0 : index
    %84 = vector.load %arg12[%c0_51, %c0_52] : memref<2x10xf32, #tpu.memory_space<vmem>>, vector<2x10xf32>
    tpu.vector_store %arg12[%c0_51, %c0_52], %83 {strides = array<i32>} : memref<2x10xf32, #tpu.memory_space<vmem>>, vector<2x10xf32>,
    return
  }
}

</mosaic_0001>

<llo_original>
// kernel: tpu_custom_call.1
$region0: #{tpu_custom_call.1}
  #allocation0 [shape = 'u32[]', space=smem, size = 0x4, offset = 0x4, fixed_abs, tag = 'smem constant byte address 0x4 - core index']
  #allocation1 [shape = 'u32[144,128]{1,0:T(1,128)}', space=vmem, size = 0x12000, scoped, tag = 'internal scratch']
  %s0 = inlined_call_operand.vmem [shape: f32[2,16,256], index: 0, kind: input, shape index: {}]
  %s1 = inlined_call_operand.hbm [shape: f32[256,256], index: 1, kind: input, shape index: {}]
  %s2 = inlined_call_operand.hbm [shape: f32[256,256], index: 2, kind: input, shape index: {}]
  %s3 = inlined_call_operand.hbm [shape: f32[256,256], index: 3, kind: input, shape index: {}]
  %s4 = inlined_call_operand.vmem [shape: f32[16,2], index: 4, kind: input, shape index: {}]
  %s5 = inlined_call_operand.hbm [shape: f32[1,2], index: 5, kind: input, shape index: {}]
  %s6 = inlined_call_operand.hbm [shape: f32[2,16], index: 6, kind: input, shape index: {}]
  %s7 = inlined_call_operand.hbm [shape: f32[1,16], index: 7, kind: input, shape index: {}]
  %s8 = inlined_call_operand.vmem [shape: f32[16,32], index: 8, kind: input, shape index: {}]
  %s9 = inlined_call_operand.vmem [shape: f32[1,32], index: 9, kind: input, shape index: {}]
  %s10 = inlined_call_operand.vmem [shape: f32[32,10], index: 10, kind: input, shape index: {}]
  %s11 = inlined_call_operand.vmem [shape: f32[1,10], index: 11, kind: input, shape index: {}]
  %s12 = inlined_call_operand.hbm [shape: f32[2,10], index: 12, kind: output, shape index: {}]
  %s13 = sld [smem:[#allocation0]]
  $region82: #{tpu_custom_call.1} parent=0
    _
  %s15 = ssub.s32 1, %s13
  %s16 = scalar_select 0, %s15, %s13
  $region1: #{tpu_custom_call.1} parent=0
    #allocation2 [shape = 'u8[262144]{0}', space=vmem, size = 0x40000, scoped, tag = 'input window, operand 1, single buffered']
    #allocation3 [shape = 's32[1]{0}', space=sflag, size = 0x4, scoped, tag = 'scoped memory for tpu_custom_call.1']
    #allocation4 [shape = 's32[1]{0}', space=sflag, size = 0x4, scoped, tag = 'scoped memory for tpu_custom_call.1']
    #allocation5 [shape = 'u8[262144]{0}', space=vmem, size = 0x40000, scoped, tag = 'input window, operand 2, single buffered']
    #allocation6 [shape = 's32[1]{0}', space=sflag, size = 0x4, scoped, tag = 'scoped memory for tpu_custom_call.1']
    #allocation7 [shape = 'u8[262144]{0}', space=vmem, size = 0x40000, scoped, tag = 'input window, operand 3, single buffered']
    #allocation8 [shape = 'u8[512]{0}', space=vmem, size = 0x400, scoped, tag = 'input window, operand 5, single buffered']
    #allocation9 [shape = 's32[1]{0}', space=sflag, size = 0x4, scoped, tag = 'scoped memory for tpu_custom_call.1']
    #allocation10 [shape = 'u8[1024]{0}', space=vmem, size = 0x400, scoped, tag = 'input window, operand 6, single buffered']
    #allocation11 [shape = 'u8[512]{0}', space=vmem, size = 0x400, scoped, tag = 'input window, operand 7, single buffered']
    #allocation12 [shape = 's32[1]{0}', space=sflag, size = 0x4, scoped, tag = 'scoped memory for tpu_custom_call.1']
    #allocation13 [shape = 'u8[1024]{0}', space=vmem, size = 0x400, scoped, tag = 'output window, operand 0, single buffered']
    %17 = vsyncpa [#allocation3], 0
    %18 = vsyncpa [#allocation6], 0
    %19 = vsyncpa [#allocation9], 0
    %20 = vsyncpa [#allocation12], 0
    %21 = vsyncpa [#allocation4], 0
    // Predicated region
    $region2: #{tpu_custom_call.1} parent=1 // pred_check
      _
    $region3: #{tpu_custom_call.1} parent=1 // pred_check_branch
      %23 = sbr.rel (0) target = $region5
    $region4: #{tpu_custom_call.1} parent=1 // pred_region
      _
    $region5: #{tpu_custom_call.1} parent=1 // pred_fallthru
      _
    // Predicated region
    $region6: #{tpu_custom_call.1} parent=1 // pred_check
      _
    $region7: #{tpu_custom_call.1} parent=1 // pred_check_branch
      %25 = sbr.rel (0) target = $region9
    $region8: #{tpu_custom_call.1} parent=1 // pred_region
      %s27 = ssub.s32 8192, 8192
      %28 = vsyncadd [#allocation3], %s27
      %s29 = sshll.u32 [#allocation2], 4
      %s30 = int_to_ptr.vmem [resolvable:$true] %s29
      %35 = dma.hbm_to_vmem [thread:$0]  %s1, 8192, %s30, [#allocation3], 256, 256, 16
    $region9: #{tpu_custom_call.1} parent=1 // pred_fallthru
      _
    // Predicated region
    $region10: #{tpu_custom_call.1} parent=1 // pred_check
      _
    $region11: #{tpu_custom_call.1} parent=1 // pred_check_branch
      %37 = sbr.rel (0) target = $region13
    $region12: #{tpu_custom_call.1} parent=1 // pred_region
      %s39 = ssub.s32 8192, 8192
      %40 = vsyncadd [#allocation6], %s39
      %s41 = sshll.u32 [#allocation5], 4
      %s42 = int_to_ptr.vmem [resolvable:$true] %s41
      %47 = dma.hbm_to_vmem [thread:$0]  %s2, 8192, %s42, [#allocation6], 256, 256, 16
    $region13: #{tpu_custom_call.1} parent=1 // pred_fallthru
      _
    // Predicated region
    $region14: #{tpu_custom_call.1} parent=1 // pred_check
      _
    $region15: #{tpu_custom_call.1} parent=1 // pred_check_branch
      %49 = sbr.rel (0) target = $region17
    $region16: #{tpu_custom_call.1} parent=1 // pred_region
      %s51 = ssub.s32 8192, 8192
      %52 = vsyncadd [#allocation6], %s51
      %s53 = sshll.u32 [#allocation7], 4
      %s54 = int_to_ptr.vmem [resolvable:$true] %s53
      %59 = dma.hbm_to_vmem [thread:$0]  %s3, 8192, %s54, [#allocation6], 256, 256, 16
    $region17: #{tpu_custom_call.1} parent=1 // pred_fallthru
      _
    // Predicated region
    $region18: #{tpu_custom_call.1} parent=1 // pred_check
      _
    $region19: #{tpu_custom_call.1} parent=1 // pred_check_branch
      %61 = sbr.rel (0) target = $region21
    $region20: #{tpu_custom_call.1} parent=1 // pred_region
      _
    $region21: #{tpu_custom_call.1} parent=1 // pred_fallthru
      _
    // Predicated region
    $region22: #{tpu_custom_call.1} parent=1 // pred_check
      _
    $region23: #{tpu_custom_call.1} parent=1 // pred_check_branch
      %63 = sbr.rel (0) target = $region25
    $region24: #{tpu_custom_call.1} parent=1 // pred_region
      %s65 = ssub.s32 16, 16
      %66 = vsyncadd [#allocation9], %s65
      %s68 = sshll.u32 [#allocation8], 4
      %s69 = int_to_ptr.vmem [resolvable:$true] %s68
      %71 = dma.hbm_to_vmem [thread:$0]  %s5, 16, %s69, [#allocation9]
    $region25: #{tpu_custom_call.1} parent=1 // pred_fallthru
      _
    // Predicated region
    $region26: #{tpu_custom_call.1} parent=1 // pred_check
      _
    $region27: #{tpu_custom_call.1} parent=1 // pred_check_branch
      %73 = sbr.rel (0) target = $region29
    $region28: #{tpu_custom_call.1} parent=1 // pred_region
      %s75 = ssub.s32 32, 32
      %76 = vsyncadd [#allocation9], %s75
      %s78 = sshll.u32 [#allocation10], 4
      %s79 = int_to_ptr.vmem [resolvable:$true] %s78
      %81 = dma.hbm_to_vmem [thread:$0]  %s6, 32, %s79, [#allocation9]
    $region29: #{tpu_custom_call.1} parent=1 // pred_fallthru
      _
    // Predicated region
    $region30: #{tpu_custom_call.1} parent=1 // pred_check
      _
    $region31: #{tpu_custom_call.1} parent=1 // pred_check_branch
      %83 = sbr.rel (0) target = $region33
    $region32: #{tpu_custom_call.1} parent=1 // pred_region
      %s85 = ssub.s32 16, 16
      %86 = vsyncadd [#allocation12], %s85
      %s88 = sshll.u32 [#allocation11], 4
      %s89 = int_to_ptr.vmem [resolvable:$true] %s88
      %91 = dma.hbm_to_vmem [thread:$0]  %s7, 16, %s89, [#allocation12]
    $region33: #{tpu_custom_call.1} parent=1 // pred_fallthru
      _
    // Predicated region
    $region34: #{tpu_custom_call.1} parent=1 // pred_check
      _
    $region35: #{tpu_custom_call.1} parent=1 // pred_check_branch
      %93 = sbr.rel (0) target = $region37
    $region36: #{tpu_custom_call.1} parent=1 // pred_region
      _
    $region37: #{tpu_custom_call.1} parent=1 // pred_fallthru
      _
    // Predicated region
    $region38: #{tpu_custom_call.1} parent=1 // pred_check
      _
    $region39: #{tpu_custom_call.1} parent=1 // pred_check_branch
      %95 = sbr.rel (0) target = $region41
    $region40: #{tpu_custom_call.1} parent=1 // pred_region
      _
    $region41: #{tpu_custom_call.1} parent=1 // pred_fallthru
      _
    // Predicated region
    $region42: #{tpu_custom_call.1} parent=1 // pred_check
      _
    $region43: #{tpu_custom_call.1} parent=1 // pred_check_branch
      %97 = sbr.rel (0) target = $region45
    $region44: #{tpu_custom_call.1} parent=1 // pred_region
      _
    $region45: #{tpu_custom_call.1} parent=1 // pred_fallthru
      _
    // Predicated region
    $region46: #{tpu_custom_call.1} parent=1 // pred_check
      _
    $region47: #{tpu_custom_call.1} parent=1 // pred_check_branch
      %99 = sbr.rel (0) target = $region49
    $region48: #{tpu_custom_call.1} parent=1 // pred_region
      _
    $region49: #{tpu_custom_call.1} parent=1 // pred_fallthru
      _
    // Predicated region
    $region50: #{tpu_custom_call.1} parent=1 // pred_check
      _
    $region51: #{tpu_custom_call.1} parent=1 // pred_check_branch
      %101 = sbr.rel (0) target = $region53
    $region52: #{tpu_custom_call.1} parent=1 // pred_region
      %102 = dma.done [#allocation3], 8192
    $region53: #{tpu_custom_call.1} parent=1 // pred_fallthru
      _
    // Predicated region
    $region54: #{tpu_custom_call.1} parent=1 // pred_check
      _
    $region55: #{tpu_custom_call.1} parent=1 // pred_check_branch
      %104 = sbr.rel (0) target = $region57
    $region56: #{tpu_custom_call.1} parent=1 // pred_region
      %105 = dma.done [#allocation6], 8192
    $region57: #{tpu_custom_call.1} parent=1 // pred_fallthru
      _
    // Predicated region
    $region58: #{tpu_custom_call.1} parent=1 // pred_check
      _
    $region59: #{tpu_custom_call.1} parent=1 // pred_check_branch
      %107 = sbr.rel (0) target = $region61
    $region60: #{tpu_custom_call.1} parent=1 // pred_region
      %108 = dma.done [#allocation6], 8192
    $region61: #{tpu_custom_call.1} parent=1 // pred_fallthru
      _
    // Predicated region
    $region62: #{tpu_custom_call.1} parent=1 // pred_check
      _
    $region63: #{tpu_custom_call.1} parent=1 // pred_check_branch
      %110 = sbr.rel (0) target = $region65
    $region64: #{tpu_custom_call.1} parent=1 // pred_region
      %111 = dma.done [#allocation9], 16
    $region65: #{tpu_custom_call.1} parent=1 // pred_fallthru
      _
    // Predicated region
    $region66: #{tpu_custom_call.1} parent=1 // pred_check
      _
    $region67: #{tpu_custom_call.1} parent=1 // pred_check_branch
      %113 = sbr.rel (0) target = $region69
    $region68: #{tpu_custom_call.1} parent=1 // pred_region
      %114 = dma.done [#allocation9], 32
    $region69: #{tpu_custom_call.1} parent=1 // pred_fallthru
      _
    // Predicated region
    $region70: #{tpu_custom_call.1} parent=1 // pred_check
      _
    $region71: #{tpu_custom_call.1} parent=1 // pred_check_branch
      %116 = sbr.rel (0) target = $region73
    $region72: #{tpu_custom_call.1} parent=1 // pred_region
      %117 = dma.done [#allocation12], 16
    $region73: #{tpu_custom_call.1} parent=1 // pred_fallthru
      _
    %v118 = vld [vmem:[%s0] sm:$0xff]
    %v119 = vld [vmem:[%s0 + $0x8] sm:$0xff]
    %v120 = vld [vmem:[%s0 + $0x10] sm:$0xff]
    %v121 = vld [vmem:[%s0 + $0x18] sm:$0xff]
    %v122 = vld [vmem:[%s0 + $0x20] sm:$0xff]
    %v123 = vld [vmem:[%s0 + $0x28] sm:$0xff]
    %v124 = vld [vmem:[%s0 + $0x30] sm:$0xff]
    %v125 = vld [vmem:[%s0 + $0x38] sm:$0xff]
    %v126 = vld [vmem:[#allocation2] sm:$0xff]
    %v127 = vld [vmem:[#allocation2 + $0x8] sm:$0xff]
    %v128 = vld [vmem:[#allocation2 + $0x10] sm:$0xff]
    %v129 = vld [vmem:[#allocation2 + $0x18] sm:$0xff]
    %v130 = vld [vmem:[#allocation2 + $0x20] sm:$0xff]
    %v131 = vld [vmem:[#allocation2 + $0x28] sm:$0xff]
    %v132 = vld [vmem:[#allocation2 + $0x30] sm:$0xff]
    %v133 = vld [vmem:[#allocation2 + $0x38] sm:$0xff]
    %v134 = vld [vmem:[#allocation2 + $0x40] sm:$0xff]
    %v135 = vld [vmem:[#allocation2 + $0x48] sm:$0xff]
    %v136 = vld [vmem:[#allocation2 + $0x50] sm:$0xff]
    %v137 = vld [vmem:[#allocation2 + $0x58] sm:$0xff]
    %v138 = vld [vmem:[#allocation2 + $0x60] sm:$0xff]
    %v139 = vld [vmem:[#allocation2 + $0x68] sm:$0xff]
    %v140 = vld [vmem:[#allocation2 + $0x70] sm:$0xff]
    %v141 = vld [vmem:[#allocation2 + $0x78] sm:$0xff]
    %v142 = vld [vmem:[#allocation2 + $0x80] sm:$0xff]
    %v143 = vld [vmem:[#allocation2 + $0x88] sm:$0xff]
    %v144 = vld [vmem:[#allocation2 + $0x90] sm:$0xff]
    %v145 = vld [vmem:[#allocation2 + $0x98] sm:$0xff]
    %v146 = vld [vmem:[#allocation2 + $0xa0] sm:$0xff]
    %v147 = vld [vmem:[#allocation2 + $0xa8] sm:$0xff]
    %v148 = vld [vmem:[#allocation2 + $0xb0] sm:$0xff]
    %v149 = vld [vmem:[#allocation2 + $0xb8] sm:$0xff]
    %v150 = vld [vmem:[#allocation2 + $0xc0] sm:$0xff]
    %v151 = vld [vmem:[#allocation2 + $0xc8] sm:$0xff]
    %v152 = vld [vmem:[#allocation2 + $0xd0] sm:$0xff]
    %v153 = vld [vmem:[#allocation2 + $0xd8] sm:$0xff]
    %v154 = vld [vmem:[#allocation2 + $0xe0] sm:$0xff]
    %v155 = vld [vmem:[#allocation2 + $0xe8] sm:$0xff]
    %v156 = vld [vmem:[#allocation2 + $0xf0] sm:$0xff]
    %v157 = vld [vmem:[#allocation2 + $0xf8] sm:$0xff]
    %v158 = vld [vmem:[#allocation2 + $0x100] sm:$0xff]
    %v159 = vld [vmem:[#allocation2 + $0x108] sm:$0xff]
    %v160 = vld [vmem:[#allocation2 + $0x110] sm:$0xff]
    %v161 = vld [vmem:[#allocation2 + $0x118] sm:$0xff]
    %v162 = vld [vmem:[#allocation2 + $0x120] sm:$0xff]
    %v163 = vld [vmem:[#allocation2 + $0x128] sm:$0xff]
    %v164 = vld [vmem:[#allocation2 + $0x130] sm:$0xff]
    %v165 = vld [vmem:[#allocation2 + $0x138] sm:$0xff]
    %v166 = vld [vmem:[#allocation2 + $0x140] sm:$0xff]
    %v167 = vld [vmem:[#allocation2 + $0x148] sm:$0xff]
    %v168 = vld [vmem:[#allocation2 + $0x150] sm:$0xff]
    %v169 = vld [vmem:[#allocation2 + $0x158] sm:$0xff]
    %v170 = vld [vmem:[#allocation2 + $0x160] sm:$0xff]
    %v171 = vld [vmem:[#allocation2 + $0x168] sm:$0xff]
    %v172 = vld [vmem:[#allocation2 + $0x170] sm:$0xff]
    %v173 = vld [vmem:[#allocation2 + $0x178] sm:$0xff]
    %v174 = vld [vmem:[#allocation2 + $0x180] sm:$0xff]
    %v175 = vld [vmem:[#allocation2 + $0x188] sm:$0xff]
    %v176 = vld [vmem:[#allocation2 + $0x190] sm:$0xff]
    %v177 = vld [vmem:[#allocation2 + $0x198] sm:$0xff]
    %v178 = vld [vmem:[#allocation2 + $0x1a0] sm:$0xff]
    %v179 = vld [vmem:[#allocation2 + $0x1a8] sm:$0xff]
    %v180 = vld [vmem:[#allocation2 + $0x1b0] sm:$0xff]
    %v181 = vld [vmem:[#allocation2 + $0x1b8] sm:$0xff]
    %v182 = vld [vmem:[#allocation2 + $0x1c0] sm:$0xff]
    %v183 = vld [vmem:[#allocation2 + $0x1c8] sm:$0xff]
    %v184 = vld [vmem:[#allocation2 + $0x1d0] sm:$0xff]
    %v185 = vld [vmem:[#allocation2 + $0x1d8] sm:$0xff]
    %v186 = vld [vmem:[#allocation2 + $0x1e0] sm:$0xff]
    %v187 = vld [vmem:[#allocation2 + $0x1e8] sm:$0xff]
    %v188 = vld [vmem:[#allocation2 + $0x1f0] sm:$0xff]
    %v189 = vld [vmem:[#allocation2 + $0x1f8] sm:$0xff]
    %190 = vmatprep.subr.mxu0 %v157
    %191 = vmatpush1.msra.mxu0 %v156
    %192 = vmatprep.subr.mxu0 %v155
    %193 = vmatpush1.msra.mxu0 %v154
    %194 = vmatprep.subr.mxu0 %v153
    %195 = vmatpush1.msra.mxu0 %v152
    %196 = vmatprep.subr.mxu0 %v151
    %197 = vmatpush1.msra.mxu0 %v150
    %198 = vmatprep.subr.mxu0 %v149
    %199 = vmatpush1.msra.mxu0 %v148
    %200 = vmatprep.subr.mxu0 %v147
    %201 = vmatpush1.msra.mxu0 %v146
    %202 = vmatprep.subr.mxu0 %v145
    %203 = vmatpush1.msra.mxu0 %v144
    %204 = vmatprep.subr.mxu0 %v143
    %205 = vmatpush1.msra.mxu0 %v142
    %206 = vmatprep.subr.mxu0 %v141
    %207 = vmatpush1.msra.mxu0 %v140
    %208 = vmatprep.subr.mxu0 %v139
    %209 = vmatpush1.msra.mxu0 %v138
    %210 = vmatprep.subr.mxu0 %v137
    %211 = vmatpush1.msra.mxu0 %v136
    %212 = vmatprep.subr.mxu0 %v135
    %213 = vmatpush1.msra.mxu0 %v134
    %214 = vmatprep.subr.mxu0 %v133
    %215 = vmatpush1.msra.mxu0 %v132
    %216 = vmatprep.subr.mxu0 %v131
    %217 = vmatpush1.msra.mxu0 %v130
    %218 = vmatprep.subr.mxu0 %v129
    %219 = vmatpush1.msra.mxu0 %v128
    %220 = vmatprep.subr.mxu0 %v127
    %221 = vmatpush1.msra.mxu0 %v126
    %222 = vmatprep.subr.mxu0 %v189
    %223 = vmatpush2.msra.mxu0 %v188
    %224 = vmatprep.subr.mxu0 %v187
    %225 = vmatpush2.msra.mxu0 %v186
    %226 = vmatprep.subr.mxu0 %v185
    %227 = vmatpush2.msra.mxu0 %v184
    %228 = vmatprep.subr.mxu0 %v183
    %229 = vmatpush2.msra.mxu0 %v182
    %230 = vmatprep.subr.mxu0 %v181
    %231 = vmatpush2.msra.mxu0 %v180
    %232 = vmatprep.subr.mxu0 %v179
    %233 = vmatpush2.msra.mxu0 %v178
    %234 = vmatprep.subr.mxu0 %v177
    %235 = vmatpush2.msra.mxu0 %v176
    %236 = vmatprep.subr.mxu0 %v175
    %237 = vmatpush2.msra.mxu0 %v174
    %238 = vmatprep.subr.mxu0 %v173
    %239 = vmatpush2.msra.mxu0 %v172
    %240 = vmatprep.subr.mxu0 %v171
    %241 = vmatpush2.msra.mxu0 %v170
    %242 = vmatprep.subr.mxu0 %v169
    %243 = vmatpush2.msra.mxu0 %v168
    %244 = vmatprep.subr.mxu0 %v167
    %245 = vmatpush2.msra.mxu0 %v166
    %246 = vmatprep.subr.mxu0 %v165
    %247 = vmatpush2.msra.mxu0 %v164
    %248 = vmatprep.subr.mxu0 %v163
    %249 = vmatpush2.msra.mxu0 %v162
    %250 = vmatprep.subr.mxu0 %v161
    %251 = vmatpush2.msra.mxu0 %v160
    %252 = vmatprep.subr.mxu0 %v159
    %253 = vmatpush2.msra.mxu0 %v158
    %254 = vmatprep.mubr.f32.mxu0 %v119
    %255 = vmatmul.mubr.f32.gmra.mxu0 %v118
    %v256 = vpop.f32.mrf.mxu0
    %v257 = vadd.f32 0.0, %v256
    %v258 = vpop.f32.mrf.mxu0
    %v259 = vadd.f32 0.0, %v258
    %260 = vmatprep.mubr.f32.mxu0 %v121
    %261 = vmatmul.mubr.f32.gmra.mxu0 %v120
    %v262 = vpop.f32.mrf.mxu0
    %v263 = vadd.f32 0.0, %v262
    %v264 = vpop.f32.mrf.mxu0
    %v265 = vadd.f32 0.0, %v264
    %266 = vmatprep.mubr.f32.mxu0 %v123
    %267 = vmatmul.mubr.f32.gmra.mxu0 %v122
    %v268 = vpop.f32.mrf.mxu0
    %v269 = vadd.f32 0.0, %v268
    %v270 = vpop.f32.mrf.mxu0
    %v271 = vadd.f32 0.0, %v270
    %272 = vmatprep.mubr.f32.mxu0 %v125
    %273 = vmatmul.mubr.f32.gmra.mxu0 %v124
    %v274 = vpop.f32.mrf.mxu0
    %v275 = vadd.f32 0.0, %v274
    %v276 = vpop.f32.mrf.mxu0
    %v277 = vadd.f32 0.0, %v276
    %278 = vdwg.mxu0
    %v279 = vadd.f32 %v118, %v257
    %v280 = vadd.f32 %v119, %v259
    %v281 = vadd.f32 %v120, %v263
    %v282 = vadd.f32 %v121, %v265
    %v283 = vadd.f32 %v122, %v269
    %v284 = vadd.f32 %v123, %v271
    %v285 = vadd.f32 %v124, %v275
    %v286 = vadd.f32 %v125, %v277
    %v287 = vadd.f32 %v118, %v119
    %288 = vadd.xlane.f32.xlu0 %v287
    %v289 = vpop.xlane.xlu0 %288
    %v290 = vadd.f32 %v120, %v121
    %291 = vadd.xlane.f32.xlu0 %v290
    %v292 = vpop.xlane.xlu0 %291
    %v293 = vadd.f32 %v122, %v123
    %294 = vadd.xlane.f32.xlu0 %v293
    %v295 = vpop.xlane.xlu0 %294
    %v296 = vadd.f32 %v124, %v125
    %297 = vadd.xlane.f32.xlu0 %v296
    %v298 = vpop.xlane.xlu0 %297
    %v299 = vmul.f32 %v289, 0.00390625
    %v300 = vmul.f32 %v292, 0.00390625
    %v301 = vmul.f32 %v295, 0.00390625
    %v302 = vmul.f32 %v298, 0.00390625
    %v303 = vld [vmem:[%s4] sm:$0xff]
    %v304 = vld [vmem:[%s4 + $0x8] sm:$0xff]
    %v305 = vld [vmem:[#allocation8] sm:$0x1]
    %v307 = vlaneseq
    %v308 = vshrl.u32 %v307, 7
    %v309 = vsub.s32 0, %v308
    %v310 = vrot.slane %v305, %v309
    %v316 = vlaneseq
    %v317 = vand.u32 %v316, 127
    %v318 = vlaneseq
    %v319 = vshrl.u32 %v318, 7
    %v320 = vsub.s32 %v317, %v319
    %v321 = vrot.slane %v299, %v320
    %v322 = vadd.s32 %v317, 4294967288
    %v323 = vlaneseq
    %v324 = vshrl.u32 %v323, 7
    %v325 = vsub.s32 %v322, %v324
    %v326 = vrot.slane %v300, %v325
    %vm327 = vcmask 130112
    %v328 = vsel %vm327, %v326, %v321
    %v329 = vlaneseq
    %v330 = vshrl.u32 %v329, 7
    %v331 = vsub.s32 %v317, %v330
    %v332 = vrot.slane %v301, %v331
    %v333 = vlaneseq
    %v334 = vshrl.u32 %v333, 7
    %v335 = vsub.s32 %v322, %v334
    %v336 = vrot.slane %v302, %v335
    %v337 = vsel %vm327, %v336, %v332
    %vm338 = vcmask 1041409
    %v339 = vsel %vm338, %v337, %v328
    %vm340 = vcmask 130048
    %v341 = vsel %vm340, %v339, 0
    %343 = vmatprep.subr.mxu0 0.0
    %344 = vmatpush1.msra.mxu0 0.0
    %345 = vmatprep.subr.mxu0 0.0
    %346 = vmatpush1.msra.mxu0 0.0
    %347 = vmatprep.subr.mxu0 0.0
    %348 = vmatpush1.msra.mxu0 0.0
    %349 = vmatprep.subr.mxu0 0.0
    %350 = vmatpush1.msra.mxu0 0.0
    %351 = vmatprep.subr.mxu0 0.0
    %352 = vmatpush1.msra.mxu0 0.0
    %353 = vmatprep.subr.mxu0 0.0
    %354 = vmatpush1.msra.mxu0 0.0
    %355 = vmatprep.subr.mxu0 0.0
    %356 = vmatpush1.msra.mxu0 0.0
    %357 = vmatprep.subr.mxu0 0.0
    %358 = vmatpush1.msra.mxu0 0.0
    %359 = vmatprep.subr.mxu0 0.0
    %360 = vmatpush1.msra.mxu0 0.0
    %361 = vmatprep.subr.mxu0 0.0
    %362 = vmatpush1.msra.mxu0 0.0
    %363 = vmatprep.subr.mxu0 0.0
    %364 = vmatpush1.msra.mxu0 0.0
    %365 = vmatprep.subr.mxu0 0.0
    %366 = vmatpush1.msra.mxu0 0.0
    %367 = vmatprep.subr.mxu0 0.0
    %368 = vmatpush1.msra.mxu0 0.0
    %369 = vmatprep.subr.mxu0 0.0
    %370 = vmatpush1.msra.mxu0 0.0
    %371 = vmatprep.subr.mxu0 0.0
    %372 = vmatpush1.msra.mxu0 %v304
    %373 = vmatprep.subr.mxu0 0.0
    %374 = vmatpush1.msra.mxu0 %v303
    %375 = vmatprep.subr.mxu0 0.0
    %376 = vmatpush2.msra.mxu0 0.0
    %377 = vmatprep.subr.mxu0 0.0
    %378 = vmatpush2.msra.mxu0 0.0
    %379 = vmatprep.subr.mxu0 0.0
    %380 = vmatpush2.msra.mxu0 0.0
    %381 = vmatprep.subr.mxu0 0.0
    %382 = vmatpush2.msra.mxu0 0.0
    %383 = vmatprep.subr.mxu0 0.0
    %384 = vmatpush2.msra.mxu0 0.0
    %385 = vmatprep.subr.mxu0 0.0
    %386 = vmatpush2.msra.mxu0 0.0
    %387 = vmatprep.subr.mxu0 0.0
    %388 = vmatpush2.msra.mxu0 0.0
    %389 = vmatprep.subr.mxu0 0.0
    %390 = vmatpush2.msra.mxu0 0.0
    %391 = vmatprep.subr.mxu0 0.0
    %392 = vmatpush2.msra.mxu0 0.0
    %393 = vmatprep.subr.mxu0 0.0
    %394 = vmatpush2.msra.mxu0 0.0
    %395 = vmatprep.subr.mxu0 0.0
    %396 = vmatpush2.msra.mxu0 0.0
    %397 = vmatprep.subr.mxu0 0.0
    %398 = vmatpush2.msra.mxu0 0.0
    %399 = vmatprep.subr.mxu0 0.0
    %400 = vmatpush2.msra.mxu0 0.0
    %401 = vmatprep.subr.mxu0 0.0
    %402 = vmatpush2.msra.mxu0 0.0
    %403 = vmatprep.subr.mxu0 0.0
    %404 = vmatpush2.msra.mxu0 0.0
    %405 = vmatprep.subr.mxu0 0.0
    %406 = vmatpush2.msra.mxu0 0.0
    %407 = vmatprep.mubr.f32.mxu0 0.0
    %408 = vmatmul.mubr.f32.gmra.mxu0 %v341
    %v409 = vpop.f32.mrf.mxu0
    %v410 = vadd.f32 %v310, %v409
    %v411 = vpop.f32.mrf.mxu0
    %412 = vdwg.mxu0
    %v413 = vmax.f32 %v410, 0.0
    %v414 = vld [vmem:[#allocation10] sm:$0x3]
    %v415 = vld [vmem:[#allocation11] sm:$0x1]
    %v417 = vlaneseq
    %v418 = vshrl.u32 %v417, 7
    %v419 = vsub.s32 0, %v418
    %v420 = vrot.slane %v415, %v419
    %vm422 = vcmask 15360
    %v424 = vsel %vm422, %v413, 0
    %vm426 = vcmask 1041408
    %v428 = vsel %vm426, %v414, 0
    %430 = vmatprep.subr.mxu0 0.0
    %431 = vmatpush1.msra.mxu0 0.0
    %432 = vmatprep.subr.mxu0 0.0
    %433 = vmatpush1.msra.mxu0 0.0
    %434 = vmatprep.subr.mxu0 0.0
    %435 = vmatpush1.msra.mxu0 0.0
    %436 = vmatprep.subr.mxu0 0.0
    %437 = vmatpush1.msra.mxu0 0.0
    %438 = vmatprep.subr.mxu0 0.0
    %439 = vmatpush1.msra.mxu0 0.0
    %440 = vmatprep.subr.mxu0 0.0
    %441 = vmatpush1.msra.mxu0 0.0
    %442 = vmatprep.subr.mxu0 0.0
    %443 = vmatpush1.msra.mxu0 0.0
    %444 = vmatprep.subr.mxu0 0.0
    %445 = vmatpush1.msra.mxu0 0.0
    %446 = vmatprep.subr.mxu0 0.0
    %447 = vmatpush1.msra.mxu0 0.0
    %448 = vmatprep.subr.mxu0 0.0
    %449 = vmatpush1.msra.mxu0 0.0
    %450 = vmatprep.subr.mxu0 0.0
    %451 = vmatpush1.msra.mxu0 0.0
    %452 = vmatprep.subr.mxu0 0.0
    %453 = vmatpush1.msra.mxu0 0.0
    %454 = vmatprep.subr.mxu0 0.0
    %455 = vmatpush1.msra.mxu0 0.0
    %456 = vmatprep.subr.mxu0 0.0
    %457 = vmatpush1.msra.mxu0 0.0
    %458 = vmatprep.subr.mxu0 0.0
    %459 = vmatpush1.msra.mxu0 0.0
    %460 = vmatprep.subr.mxu0 0.0
    %461 = vmatpush1.msra.mxu0 %v428
    %462 = vmatprep.subr.mxu0 0.0
    %463 = vmatpush2.msra.mxu0 0.0
    %464 = vmatprep.subr.mxu0 0.0
    %465 = vmatpush2.msra.mxu0 0.0
    %466 = vmatprep.subr.mxu0 0.0
    %467 = vmatpush2.msra.mxu0 0.0
    %468 = vmatprep.subr.mxu0 0.0
    %469 = vmatpush2.msra.mxu0 0.0
    %470 = vmatprep.subr.mxu0 0.0
    %471 = vmatpush2.msra.mxu0 0.0
    %472 = vmatprep.subr.mxu0 0.0
    %473 = vmatpush2.msra.mxu0 0.0
    %474 = vmatprep.subr.mxu0 0.0
    %475 = vmatpush2.msra.mxu0 0.0
    %476 = vmatprep.subr.mxu0 0.0
    %477 = vmatpush2.msra.mxu0 0.0
    %478 = vmatprep.subr.mxu0 0.0
    %479 = vmatpush2.msra.mxu0 0.0
    %480 = vmatprep.subr.mxu0 0.0
    %481 = vmatpush2.msra.mxu0 0.0
    %482 = vmatprep.subr.mxu0 0.0
    %483 = vmatpush2.msra.mxu0 0.0
    %484 = vmatprep.subr.mxu0 0.0
    %485 = vmatpush2.msra.mxu0 0.0
    %486 = vmatprep.subr.mxu0 0.0
    %487 = vmatpush2.msra.mxu0 0.0
    %488 = vmatprep.subr.mxu0 0.0
    %489 = vmatpush2.msra.mxu0 0.0
    %490 = vmatprep.subr.mxu0 0.0
    %491 = vmatpush2.msra.mxu0 0.0
    %492 = vmatprep.subr.mxu0 0.0
    %493 = vmatpush2.msra.mxu0 0.0
    %494 = vmatprep.mubr.f32.mxu0 0.0
    %495 = vmatmul.mubr.f32.gmra.mxu0 %v424
    %v496 = vpop.f32.mrf.mxu0
    %v497 = vadd.f32 %v420, %v496
    %v498 = vpop.f32.mrf.mxu0
    %499 = vdwg.mxu0
    %v500 = vxor.u32 %v497, 2147483648
    %v501 = vmul.f32 %v500, 1.442695
    %v502 = vpow.pop %v501
    %v503 = vadd.f32 %v502, 1.0
    %v504 = vrcp.pop %v503
    %v505 = vmul.f32 1.0, %v504
    %v506 = vlaneseq
    %v507 = vshrl.u32 %v506, 7
    %v508 = vsub.s32 0, %v507
    %v509 = vrot.slane %v505, %v508
    %511 = vbcast.lane.b32.xlu0 %v509, 256
    %v512 = vpop.permute.xlu0 %511
    %s514 = sor.u32 256, 8
    %515 = vbcast.lane.b32.xlu0 %v509, %s514
    %v516 = vpop.permute.xlu0 %515
    %v517 = vlaneseq
    %v518 = vshrl.u32 %v517, 7
    %v519 = vsub.s32 1, %v518
    %v520 = vrot.slane %v505, %v519
    %522 = vbcast.lane.b32.xlu0 %v520, 256
    %v523 = vpop.permute.xlu0 %522
    %s525 = sor.u32 256, 8
    %526 = vbcast.lane.b32.xlu0 %v520, %s525
    %v527 = vpop.permute.xlu0 %526
    %v528 = vmul.f32 %v118, %v512
    %v529 = vmul.f32 %v119, %v512
    %v530 = vmul.f32 %v120, %v516
    %v531 = vmul.f32 %v121, %v516
    %v532 = vmul.f32 %v122, %v523
    %v533 = vmul.f32 %v123, %v523
    %v534 = vmul.f32 %v124, %v527
    %v535 = vmul.f32 %v125, %v527
    %v536 = vadd.f32 %v118, %v120
    %v537 = vrot.slane %v536, 4
    %v538 = vadd.f32 %v536, %v537
    %v539 = vrot.slane %v538, 2
    %v540 = vadd.f32 %v538, %v539
    %v541 = vrot.slane %v540, 1
    %v542 = vadd.f32 %v540, %v541
    %v543 = vadd.f32 %v119, %v121
    %v544 = vrot.slane %v543, 4
    %v545 = vadd.f32 %v543, %v544
    %v546 = vrot.slane %v545, 2
    %v547 = vadd.f32 %v545, %v546
    %v548 = vrot.slane %v547, 1
    %v549 = vadd.f32 %v547, %v548
    %v550 = vadd.f32 %v122, %v124
    %v551 = vrot.slane %v550, 4
    %v552 = vadd.f32 %v550, %v551
    %v553 = vrot.slane %v552, 2
    %v554 = vadd.f32 %v552, %v553
    %v555 = vrot.slane %v554, 1
    %v556 = vadd.f32 %v554, %v555
    %v557 = vadd.f32 %v123, %v125
    %v558 = vrot.slane %v557, 4
    %v559 = vadd.f32 %v557, %v558
    %v560 = vrot.slane %v559, 2
    %v561 = vadd.f32 %v559, %v560
    %v562 = vrot.slane %v561, 1
    %v563 = vadd.f32 %v561, %v562
    %v564 = vmul.f32 %v542, 0.0625
    %v565 = vmul.f32 %v549, 0.0625
    %v566 = vmul.f32 %v556, 0.0625
    %v567 = vmul.f32 %v563, 0.0625
    %v568 = vmax.f32 %v118, %v120
    %v569 = vrot.slane %v568, 4
    %v570 = vmax.f32 %v568, %v569
    %v571 = vrot.slane %v570, 2
    %v572 = vmax.f32 %v570, %v571
    %v573 = vrot.slane %v572, 1
    %v574 = vmax.f32 %v572, %v573
    %v575 = vmax.f32 %v119, %v121
    %v576 = vrot.slane %v575, 4
    %v577 = vmax.f32 %v575, %v576
    %v578 = vrot.slane %v577, 2
    %v579 = vmax.f32 %v577, %v578
    %v580 = vrot.slane %v579, 1
    %v581 = vmax.f32 %v579, %v580
    %v582 = vmax.f32 %v122, %v124
    %v583 = vrot.slane %v582, 4
    %v584 = vmax.f32 %v582, %v583
    %v585 = vrot.slane %v584, 2
    %v586 = vmax.f32 %v584, %v585
    %v587 = vrot.slane %v586, 1
    %v588 = vmax.f32 %v586, %v587
    %v589 = vmax.f32 %v123, %v125
    %v590 = vrot.slane %v589, 4
    %v591 = vmax.f32 %v589, %v590
    %v592 = vrot.slane %v591, 2
    %v593 = vmax.f32 %v591, %v592
    %v594 = vrot.slane %v593, 1
    %v595 = vmax.f32 %v593, %v594
    %v596 = vld [vmem:[#allocation5] sm:$0xff]
    %v597 = vld [vmem:[#allocation5 + $0x8] sm:$0xff]
    %v598 = vld [vmem:[#allocation5 + $0x10] sm:$0xff]
    %v599 = vld [vmem:[#allocation5 + $0x18] sm:$0xff]
    %v600 = vld [vmem:[#allocation5 + $0x20] sm:$0xff]
    %v601 = vld [vmem:[#allocation5 + $0x28] sm:$0xff]
    %v602 = vld [vmem:[#allocation5 + $0x30] sm:$0xff]
    %v603 = vld [vmem:[#allocation5 + $0x38] sm:$0xff]
    %v604 = vld [vmem:[#allocation5 + $0x40] sm:$0xff]
    %v605 = vld [vmem:[#allocation5 + $0x48] sm:$0xff]
    %v606 = vld [vmem:[#allocation5 + $0x50] sm:$0xff]
    %v607 = vld [vmem:[#allocation5 + $0x58] sm:$0xff]
    %v608 = vld [vmem:[#allocation5 + $0x60] sm:$0xff]
    %v609 = vld [vmem:[#allocation5 + $0x68] sm:$0xff]
    %v610 = vld [vmem:[#allocation5 + $0x70] sm:$0xff]
    %v611 = vld [vmem:[#allocation5 + $0x78] sm:$0xff]
    %v612 = vld [vmem:[#allocation5 + $0x80] sm:$0xff]
    %v613 = vld [vmem:[#allocation5 + $0x88] sm:$0xff]
    %v614 = vld [vmem:[#allocation5 + $0x90] sm:$0xff]
    %v615 = vld [vmem:[#allocation5 + $0x98] sm:$0xff]
    %v616 = vld [vmem:[#allocation5 + $0xa0] sm:$0xff]
    %v617 = vld [vmem:[#allocation5 + $0xa8] sm:$0xff]
    %v618 = vld [vmem:[#allocation5 + $0xb0] sm:$0xff]
    %v619 = vld [vmem:[#allocation5 + $0xb8] sm:$0xff]
    %v620 = vld [vmem:[#allocation5 + $0xc0] sm:$0xff]
    %v621 = vld [vmem:[#allocation5 + $0xc8] sm:$0xff]
    %v622 = vld [vmem:[#allocation5 + $0xd0] sm:$0xff]
    %v623 = vld [vmem:[#allocation5 + $0xd8] sm:$0xff]
    %v624 = vld [vmem:[#allocation5 + $0xe0] sm:$0xff]
    %v625 = vld [vmem:[#allocation5 + $0xe8] sm:$0xff]
    %v626 = vld [vmem:[#allocation5 + $0xf0] sm:$0xff]
    %v627 = vld [vmem:[#allocation5 + $0xf8] sm:$0xff]
    %v628 = vld [vmem:[#allocation5 + $0x100] sm:$0xff]
    %v629 = vld [vmem:[#allocation5 + $0x108] sm:$0xff]
    %v630 = vld [vmem:[#allocation5 + $0x110] sm:$0xff]
    %v631 = vld [vmem:[#allocation5 + $0x118] sm:$0xff]
    %v632 = vld [vmem:[#allocation5 + $0x120] sm:$0xff]
    %v633 = vld [vmem:[#allocation5 + $0x128] sm:$0xff]
    %v634 = vld [vmem:[#allocation5 + $0x130] sm:$0xff]
    %v635 = vld [vmem:[#allocation5 + $0x138] sm:$0xff]
    %v636 = vld [vmem:[#allocation5 + $0x140] sm:$0xff]
    %v637 = vld [vmem:[#allocation5 + $0x148] sm:$0xff]
    %v638 = vld [vmem:[#allocation5 + $0x150] sm:$0xff]
    %v639 = vld [vmem:[#allocation5 + $0x158] sm:$0xff]
    %v640 = vld [vmem:[#allocation5 + $0x160] sm:$0xff]
    %v641 = vld [vmem:[#allocation5 + $0x168] sm:$0xff]
    %v642 = vld [vmem:[#allocation5 + $0x170] sm:$0xff]
    %v643 = vld [vmem:[#allocation5 + $0x178] sm:$0xff]
    %v644 = vld [vmem:[#allocation5 + $0x180] sm:$0xff]
    %v645 = vld [vmem:[#allocation5 + $0x188] sm:$0xff]
    %v646 = vld [vmem:[#allocation5 + $0x190] sm:$0xff]
    %v647 = vld [vmem:[#allocation5 + $0x198] sm:$0xff]
    %v648 = vld [vmem:[#allocation5 + $0x1a0] sm:$0xff]
    %v649 = vld [vmem:[#allocation5 + $0x1a8] sm:$0xff]
    %v650 = vld [vmem:[#allocation5 + $0x1b0] sm:$0xff]
    %v651 = vld [vmem:[#allocation5 + $0x1b8] sm:$0xff]
    %v652 = vld [vmem:[#allocation5 + $0x1c0] sm:$0xff]
    %v653 = vld [vmem:[#allocation5 + $0x1c8] sm:$0xff]
    %v654 = vld [vmem:[#allocation5 + $0x1d0] sm:$0xff]
    %v655 = vld [vmem:[#allocation5 + $0x1d8] sm:$0xff]
    %v656 = vld [vmem:[#allocation5 + $0x1e0] sm:$0xff]
    %v657 = vld [vmem:[#allocation5 + $0x1e8] sm:$0xff]
    %v658 = vld [vmem:[#allocation5 + $0x1f0] sm:$0xff]
    %v659 = vld [vmem:[#allocation5 + $0x1f8] sm:$0xff]
    %v660 = vld [vmem:[#allocation7] sm:$0xff]
    %v661 = vld [vmem:[#allocation7 + $0x8] sm:$0xff]
    %v662 = vld [vmem:[#allocation7 + $0x10] sm:$0xff]
    %v663 = vld [vmem:[#allocation7 + $0x18] sm:$0xff]
    %v664 = vld [vmem:[#allocation7 + $0x20] sm:$0xff]
    %v665 = vld [vmem:[#allocation7 + $0x28] sm:$0xff]
    %v666 = vld [vmem:[#allocation7 + $0x30] sm:$0xff]
    %v667 = vld [vmem:[#allocation7 + $0x38] sm:$0xff]
    %v668 = vld [vmem:[#allocation7 + $0x40] sm:$0xff]
    %v669 = vld [vmem:[#allocation7 + $0x48] sm:$0xff]
    %v670 = vld [vmem:[#allocation7 + $0x50] sm:$0xff]
    %v671 = vld [vmem:[#allocation7 + $0x58] sm:$0xff]
    %v672 = vld [vmem:[#allocation7 + $0x60] sm:$0xff]
    %v673 = vld [vmem:[#allocation7 + $0x68] sm:$0xff]
    %v674 = vld [vmem:[#allocation7 + $0x70] sm:$0xff]
    %v675 = vld [vmem:[#allocation7 + $0x78] sm:$0xff]
    %v676 = vld [vmem:[#allocation7 + $0x80] sm:$0xff]
    %v677 = vld [vmem:[#allocation7 + $0x88] sm:$0xff]
    %v678 = vld [vmem:[#allocation7 + $0x90] sm:$0xff]
    %v679 = vld [vmem:[#allocation7 + $0x98] sm:$0xff]
    %v680 = vld [vmem:[#allocation7 + $0xa0] sm:$0xff]
    %v681 = vld [vmem:[#allocation7 + $0xa8] sm:$0xff]
    %v682 = vld [vmem:[#allocation7 + $0xb0] sm:$0xff]
    %v683 = vld [vmem:[#allocation7 + $0xb8] sm:$0xff]
    %v684 = vld [vmem:[#allocation7 + $0xc0] sm:$0xff]
    %v685 = vld [vmem:[#allocation7 + $0xc8] sm:$0xff]
    %v686 = vld [vmem:[#allocation7 + $0xd0] sm:$0xff]
    %v687 = vld [vmem:[#allocation7 + $0xd8] sm:$0xff]
    %v688 = vld [vmem:[#allocation7 + $0xe0] sm:$0xff]
    %v689 = vld [vmem:[#allocation7 + $0xe8] sm:$0xff]
    %v690 = vld [vmem:[#allocation7 + $0xf0] sm:$0xff]
    %v691 = vld [vmem:[#allocation7 + $0xf8] sm:$0xff]
    %v692 = vld [vmem:[#allocation7 + $0x100] sm:$0xff]
    %v693 = vld [vmem:[#allocation7 + $0x108] sm:$0xff]
    %v694 = vld [vmem:[#allocation7 + $0x110] sm:$0xff]
    %v695 = vld [vmem:[#allocation7 + $0x118] sm:$0xff]
    %v696 = vld [vmem:[#allocation7 + $0x120] sm:$0xff]
    %v697 = vld [vmem:[#allocation7 + $0x128] sm:$0xff]
    %v698 = vld [vmem:[#allocation7 + $0x130] sm:$0xff]
    %v699 = vld [vmem:[#allocation7 + $0x138] sm:$0xff]
    %v700 = vld [vmem:[#allocation7 + $0x140] sm:$0xff]
    %v701 = vld [vmem:[#allocation7 + $0x148] sm:$0xff]
    %v702 = vld [vmem:[#allocation7 + $0x150] sm:$0xff]
    %v703 = vld [vmem:[#allocation7 + $0x158] sm:$0xff]
    %v704 = vld [vmem:[#allocation7 + $0x160] sm:$0xff]
    %v705 = vld [vmem:[#allocation7 + $0x168] sm:$0xff]
    %v706 = vld [vmem:[#allocation7 + $0x170] sm:$0xff]
    %v707 = vld [vmem:[#allocation7 + $0x178] sm:$0xff]
    %v708 = vld [vmem:[#allocation7 + $0x180] sm:$0xff]
    %v709 = vld [vmem:[#allocation7 + $0x188] sm:$0xff]
    %v710 = vld [vmem:[#allocation7 + $0x190] sm:$0xff]
    %v711 = vld [vmem:[#allocation7 + $0x198] sm:$0xff]
    %v712 = vld [vmem:[#allocation7 + $0x1a0] sm:$0xff]
    %v713 = vld [vmem:[#allocation7 + $0x1a8] sm:$0xff]
    %v714 = vld [vmem:[#allocation7 + $0x1b0] sm:$0xff]
    %v715 = vld [vmem:[#allocation7 + $0x1b8] sm:$0xff]
    %v716 = vld [vmem:[#allocation7 + $0x1c0] sm:$0xff]
    %v717 = vld [vmem:[#allocation7 + $0x1c8] sm:$0xff]
    %v718 = vld [vmem:[#allocation7 + $0x1d0] sm:$0xff]
    %v719 = vld [vmem:[#allocation7 + $0x1d8] sm:$0xff]
    %v720 = vld [vmem:[#allocation7 + $0x1e0] sm:$0xff]
    %v721 = vld [vmem:[#allocation7 + $0x1e8] sm:$0xff]
    %v722 = vld [vmem:[#allocation7 + $0x1f0] sm:$0xff]
    %v723 = vld [vmem:[#allocation7 + $0x1f8] sm:$0xff]
    %v728 = vsel %vm338, %v588, %v574
    %v729 = vsel %vm338, %v595, %v581
    %732 = vmatprep.subr.mxu0 %v691
    %733 = vmatpush1.msra.mxu0 %v690
    %734 = vmatprep.subr.mxu0 %v689
    %735 = vmatpush1.msra.mxu0 %v688
    %736 = vmatprep.subr.mxu0 %v687
    %737 = vmatpush1.msra.mxu0 %v686
    %738 = vmatprep.subr.mxu0 %v685
    %739 = vmatpush1.msra.mxu0 %v684
    %740 = vmatprep.subr.mxu0 %v683
    %741 = vmatpush1.msra.mxu0 %v682
    %742 = vmatprep.subr.mxu0 %v681
    %743 = vmatpush1.msra.mxu0 %v680
    %744 = vmatprep.subr.mxu0 %v679
    %745 = vmatpush1.msra.mxu0 %v678
    %746 = vmatprep.subr.mxu0 %v677
    %747 = vmatpush1.msra.mxu0 %v676
    %748 = vmatprep.subr.mxu0 %v675
    %749 = vmatpush1.msra.mxu0 %v674
    %750 = vmatprep.subr.mxu0 %v673
    %751 = vmatpush1.msra.mxu0 %v672
    %752 = vmatprep.subr.mxu0 %v671
    %753 = vmatpush1.msra.mxu0 %v670
    %754 = vmatprep.subr.mxu0 %v669
    %755 = vmatpush1.msra.mxu0 %v668
    %756 = vmatprep.subr.mxu0 %v667
    %757 = vmatpush1.msra.mxu0 %v666
    %758 = vmatprep.subr.mxu0 %v665
    %759 = vmatpush1.msra.mxu0 %v664
    %760 = vmatprep.subr.mxu0 %v663
    %761 = vmatpush1.msra.mxu0 %v662
    %762 = vmatprep.subr.mxu0 %v661
    %763 = vmatpush1.msra.mxu0 %v660
    %764 = vmatprep.subr.mxu0 %v723
    %765 = vmatpush2.msra.mxu0 %v722
    %766 = vmatprep.subr.mxu0 %v721
    %767 = vmatpush2.msra.mxu0 %v720
    %768 = vmatprep.subr.mxu0 %v719
    %769 = vmatpush2.msra.mxu0 %v718
    %770 = vmatprep.subr.mxu0 %v717
    %771 = vmatpush2.msra.mxu0 %v716
    %772 = vmatprep.subr.mxu0 %v715
    %773 = vmatpush2.msra.mxu0 %v714
    %774 = vmatprep.subr.mxu0 %v713
    %775 = vmatpush2.msra.mxu0 %v712
    %776 = vmatprep.subr.mxu0 %v711
    %777 = vmatpush2.msra.mxu0 %v710
    %778 = vmatprep.subr.mxu0 %v709
    %779 = vmatpush2.msra.mxu0 %v708
    %780 = vmatprep.subr.mxu0 %v707
    %781 = vmatpush2.msra.mxu0 %v706
    %782 = vmatprep.subr.mxu0 %v705
    %783 = vmatpush2.msra.mxu0 %v704
    %784 = vmatprep.subr.mxu0 %v703
    %785 = vmatpush2.msra.mxu0 %v702
    %786 = vmatprep.subr.mxu0 %v701
    %787 = vmatpush2.msra.mxu0 %v700
    %788 = vmatprep.subr.mxu0 %v699
    %789 = vmatpush2.msra.mxu0 %v698
    %790 = vmatprep.subr.mxu0 %v697
    %791 = vmatpush2.msra.mxu0 %v696
    %792 = vmatprep.subr.mxu0 %v695
    %793 = vmatpush2.msra.mxu0 %v694
    %794 = vmatprep.subr.mxu0 %v693
    %795 = vmatpush2.msra.mxu0 %v692
    %796 = vmatprep.mubr.f32.mxu0 %v729
    %797 = vmatmul.mubr.f32.gmra.mxu0 %v728
    %v798 = vpop.f32.mrf.mxu0
    %v799 = vadd.f32 0.0, %v798
    %v800 = vpop.f32.mrf.mxu0
    %v801 = vadd.f32 0.0, %v800
    %802 = vdwg.mxu0
    %v807 = vsel %vm338, %v566, %v564
    %v808 = vsel %vm338, %v567, %v565
    %811 = vmatprep.subr.mxu0 %v627
    %812 = vmatpush1.msra.mxu0 %v626
    %813 = vmatprep.subr.mxu0 %v625
    %814 = vmatpush1.msra.mxu0 %v624
    %815 = vmatprep.subr.mxu0 %v623
    %816 = vmatpush1.msra.mxu0 %v622
    %817 = vmatprep.subr.mxu0 %v621
    %818 = vmatpush1.msra.mxu0 %v620
    %819 = vmatprep.subr.mxu0 %v619
    %820 = vmatpush1.msra.mxu0 %v618
    %821 = vmatprep.subr.mxu0 %v617
    %822 = vmatpush1.msra.mxu0 %v616
    %823 = vmatprep.subr.mxu0 %v615
    %824 = vmatpush1.msra.mxu0 %v614
    %825 = vmatprep.subr.mxu0 %v613
    %826 = vmatpush1.msra.mxu0 %v612
    %827 = vmatprep.subr.mxu0 %v611
    %828 = vmatpush1.msra.mxu0 %v610
    %829 = vmatprep.subr.mxu0 %v609
    %830 = vmatpush1.msra.mxu0 %v608
    %831 = vmatprep.subr.mxu0 %v607
    %832 = vmatpush1.msra.mxu0 %v606
    %833 = vmatprep.subr.mxu0 %v605
    %834 = vmatpush1.msra.mxu0 %v604
    %835 = vmatprep.subr.mxu0 %v603
    %836 = vmatpush1.msra.mxu0 %v602
    %837 = vmatprep.subr.mxu0 %v601
    %838 = vmatpush1.msra.mxu0 %v600
    %839 = vmatprep.subr.mxu0 %v599
    %840 = vmatpush1.msra.mxu0 %v598
    %841 = vmatprep.subr.mxu0 %v597
    %842 = vmatpush1.msra.mxu0 %v596
    %843 = vmatprep.subr.mxu0 %v659
    %844 = vmatpush2.msra.mxu0 %v658
    %845 = vmatprep.subr.mxu0 %v657
    %846 = vmatpush2.msra.mxu0 %v656
    %847 = vmatprep.subr.mxu0 %v655
    %848 = vmatpush2.msra.mxu0 %v654
    %849 = vmatprep.subr.mxu0 %v653
    %850 = vmatpush2.msra.mxu0 %v652
    %851 = vmatprep.subr.mxu0 %v651
    %852 = vmatpush2.msra.mxu0 %v650
    %853 = vmatprep.subr.mxu0 %v649
    %854 = vmatpush2.msra.mxu0 %v648
    %855 = vmatprep.subr.mxu0 %v647
    %856 = vmatpush2.msra.mxu0 %v646
    %857 = vmatprep.subr.mxu0 %v645
    %858 = vmatpush2.msra.mxu0 %v644
    %859 = vmatprep.subr.mxu0 %v643
    %860 = vmatpush2.msra.mxu0 %v642
    %861 = vmatprep.subr.mxu0 %v641
    %862 = vmatpush2.msra.mxu0 %v640
    %863 = vmatprep.subr.mxu0 %v639
    %864 = vmatpush2.msra.mxu0 %v638
    %865 = vmatprep.subr.mxu0 %v637
    %866 = vmatpush2.msra.mxu0 %v636
    %867 = vmatprep.subr.mxu0 %v635
    %868 = vmatpush2.msra.mxu0 %v634
    %869 = vmatprep.subr.mxu0 %v633
    %870 = vmatpush2.msra.mxu0 %v632
    %871 = vmatprep.subr.mxu0 %v631
    %872 = vmatpush2.msra.mxu0 %v630
    %873 = vmatprep.subr.mxu0 %v629
    %874 = vmatpush2.msra.mxu0 %v628
    %875 = vmatprep.mubr.f32.mxu0 %v808
    %876 = vmatmul.mubr.f32.gmra.mxu0 %v807
    %v877 = vpop.f32.mrf.mxu0
    %v878 = vadd.f32 %v799, %v877
    %v879 = vpop.f32.mrf.mxu0
    %v880 = vadd.f32 %v801, %v879
    %881 = vdwg.mxu0
    %v882 = vadd.f32 %v878, 0.05
    %v883 = vadd.f32 %v880, 0.05
    %v884 = vmul.f32 %v882, 0.999995
    %v885 = vmul.f32 %v883, 0.999995
    %v886 = vadd.f32 %v884, 0.0
    %v887 = vadd.f32 %v885, 0.0
    %v888 = vxor.u32 %v886, 2147483648
    %v889 = vxor.u32 %v887, 2147483648
    %v890 = vmul.f32 %v888, 1.442695
    %v891 = vpow.pop %v890
    %v892 = vmul.f32 %v889, 1.442695
    %v893 = vpow.pop %v892
    %v894 = vadd.f32 %v891, 1.0
    %v895 = vadd.f32 %v893, 1.0
    %v896 = vrcp.pop %v894
    %v897 = vmul.f32 1.0, %v896
    %v898 = vrcp.pop %v895
    %v899 = vmul.f32 1.0, %v898
    %v902 = vcombine.low %v897, %v899
    %v904 = vunpack.c.l.s4 1966171168
    %v905 = vunpack.c.0.s8 %v904
    %v906 = vlaneseq
    %v907 = vshrl.u32 %v906, 7
    %v908 = vsub.s32 %v905, %v907
    %v909 = vrot.slane %v902, %v908
    %v910 = vcombine.high %v909, %v909
    %v912 = vunpack.c.l.s4 1966171168
    %v913 = vunpack.c.0.s8 %v912
    %v914 = vlaneseq
    %v915 = vshrl.u32 %v914, 7
    %v916 = vsub.s32 %v913, %v915
    %v917 = vrot.slane %v909, %v916
    %v919 = vunpack.c.l.s4 1966171168
    %v920 = vunpack.c.0.s8 %v919
    %v921 = vlaneseq
    %v922 = vshrl.u32 %v921, 7
    %v923 = vsub.s32 %v920, %v922
    %v924 = vrot.slane %v910, %v923
    %v925 = vlaneseq
    %v926 = vshrl.u32 %v925, 7
    %v927 = vsub.s32 0, %v926
    %v928 = vrot.slane %v917, %v927
    %v929 = vlaneseq
    %v930 = vshrl.u32 %v929, 7
    %v931 = vsub.s32 1, %v930
    %v932 = vrot.slane %v917, %v931
    %v933 = vlaneseq
    %v934 = vshrl.u32 %v933, 7
    %v935 = vsub.s32 0, %v934
    %v936 = vrot.slane %v924, %v935
    %v937 = vlaneseq
    %v938 = vshrl.u32 %v937, 7
    %v939 = vsub.s32 1, %v938
    %v940 = vrot.slane %v924, %v939
    %v945 = vmul.f32 %v528, %v928
    %v946 = vmul.f32 %v529, %v932
    %v947 = vmul.f32 %v530, %v928
    %v948 = vmul.f32 %v531, %v932
    %v949 = vmul.f32 %v532, %v936
    %v950 = vmul.f32 %v533, %v940
    %v951 = vmul.f32 %v534, %v936
    %v952 = vmul.f32 %v535, %v940
    %v953 = vadd.f32 %v118, %v945
    %v954 = vadd.f32 %v119, %v946
    %v955 = vadd.f32 %v120, %v947
    %v956 = vadd.f32 %v121, %v948
    %v957 = vadd.f32 %v122, %v949
    %v958 = vadd.f32 %v123, %v950
    %v959 = vadd.f32 %v124, %v951
    %v960 = vadd.f32 %v125, %v952
    %v961 = vmul.f32 %v953, 0.62245935
    %v962 = vmul.f32 %v954, 0.62245935
    %v963 = vmul.f32 %v955, 0.62245935
    %v964 = vmul.f32 %v956, 0.62245935
    %v965 = vmul.f32 %v957, 0.62245935
    %v966 = vmul.f32 %v958, 0.62245935
    %v967 = vmul.f32 %v959, 0.62245935
    %v968 = vmul.f32 %v960, 0.62245935
    %v969 = vmul.f32 %v279, 0.37754068
    %v970 = vmul.f32 %v280, 0.37754068
    %v971 = vmul.f32 %v281, 0.37754068
    %v972 = vmul.f32 %v282, 0.37754068
    %v973 = vmul.f32 %v283, 0.37754068
    %v974 = vmul.f32 %v284, 0.37754068
    %v975 = vmul.f32 %v285, 0.37754068
    %v976 = vmul.f32 %v286, 0.37754068
    %v977 = vadd.f32 %v961, %v969
    %v978 = vadd.f32 %v962, %v970
    %v979 = vadd.f32 %v963, %v971
    %v980 = vadd.f32 %v964, %v972
    %v981 = vadd.f32 %v965, %v973
    %v982 = vadd.f32 %v966, %v974
    %v983 = vadd.f32 %v967, %v975
    %v984 = vadd.f32 %v968, %v976
    %v985 = vadd.f32 %v977, %v978
    %986 = vadd.xlane.f32.xlu0 %v985
    %v987 = vpop.xlane.xlu0 %986
    %v988 = vadd.f32 %v979, %v980
    %989 = vadd.xlane.f32.xlu0 %v988
    %v990 = vpop.xlane.xlu0 %989
    %v991 = vadd.f32 %v981, %v982
    %992 = vadd.xlane.f32.xlu0 %v991
    %v993 = vpop.xlane.xlu0 %992
    %v994 = vadd.f32 %v983, %v984
    %995 = vadd.xlane.f32.xlu0 %v994
    %v996 = vpop.xlane.xlu0 %995
    %v997 = vmul.f32 %v987, 0.00390625
    %v998 = vmul.f32 %v990, 0.00390625
    %v999 = vmul.f32 %v993, 0.00390625
    %v1000 = vmul.f32 %v996, 0.00390625
    %v1001 = vld [vmem:[%s8] sm:$0xff]
    %v1002 = vld [vmem:[%s8 + $0x8] sm:$0xff]
    %v1003 = vld [vmem:[%s9] sm:$0x1]
    %v1005 = vlaneseq
    %v1006 = vshrl.u32 %v1005, 7
    %v1007 = vsub.s32 0, %v1006
    %v1008 = vrot.slane %v1003, %v1007
    %v1014 = vlaneseq
    %v1015 = vshrl.u32 %v1014, 7
    %v1016 = vsub.s32 %v317, %v1015
    %v1017 = vrot.slane %v997, %v1016
    %v1018 = vlaneseq
    %v1019 = vshrl.u32 %v1018, 7
    %v1020 = vsub.s32 %v322, %v1019
    %v1021 = vrot.slane %v998, %v1020
    %v1022 = vsel %vm327, %v1021, %v1017
    %v1023 = vlaneseq
    %v1024 = vshrl.u32 %v1023, 7
    %v1025 = vsub.s32 %v317, %v1024
    %v1026 = vrot.slane %v999, %v1025
    %v1027 = vlaneseq
    %v1028 = vshrl.u32 %v1027, 7
    %v1029 = vsub.s32 %v322, %v1028
    %v1030 = vrot.slane %v1000, %v1029
    %v1031 = vsel %vm327, %v1030, %v1026
    %v1032 = vsel %vm338, %v1031, %v1022
    %v1033 = vsel %vm340, %v1032, 0
    %1035 = vmatprep.subr.mxu0 0.0
    %1036 = vmatpush1.msra.mxu0 0.0
    %1037 = vmatprep.subr.mxu0 0.0
    %1038 = vmatpush1.msra.mxu0 0.0
    %1039 = vmatprep.subr.mxu0 0.0
    %1040 = vmatpush1.msra.mxu0 0.0
    %1041 = vmatprep.subr.mxu0 0.0
    %1042 = vmatpush1.msra.mxu0 0.0
    %1043 = vmatprep.subr.mxu0 0.0
    %1044 = vmatpush1.msra.mxu0 0.0
    %1045 = vmatprep.subr.mxu0 0.0
    %1046 = vmatpush1.msra.mxu0 0.0
    %1047 = vmatprep.subr.mxu0 0.0
    %1048 = vmatpush1.msra.mxu0 0.0
    %1049 = vmatprep.subr.mxu0 0.0
    %1050 = vmatpush1.msra.mxu0 0.0
    %1051 = vmatprep.subr.mxu0 0.0
    %1052 = vmatpush1.msra.mxu0 0.0
    %1053 = vmatprep.subr.mxu0 0.0
    %1054 = vmatpush1.msra.mxu0 0.0
    %1055 = vmatprep.subr.mxu0 0.0
    %1056 = vmatpush1.msra.mxu0 0.0
    %1057 = vmatprep.subr.mxu0 0.0
    %1058 = vmatpush1.msra.mxu0 0.0
    %1059 = vmatprep.subr.mxu0 0.0
    %1060 = vmatpush1.msra.mxu0 0.0
    %1061 = vmatprep.subr.mxu0 0.0
    %1062 = vmatpush1.msra.mxu0 0.0
    %1063 = vmatprep.subr.mxu0 0.0
    %1064 = vmatpush1.msra.mxu0 %v1002
    %1065 = vmatprep.subr.mxu0 0.0
    %1066 = vmatpush1.msra.mxu0 %v1001
    %1067 = vmatprep.subr.mxu0 0.0
    %1068 = vmatpush2.msra.mxu0 0.0
    %1069 = vmatprep.subr.mxu0 0.0
    %1070 = vmatpush2.msra.mxu0 0.0
    %1071 = vmatprep.subr.mxu0 0.0
    %1072 = vmatpush2.msra.mxu0 0.0
    %1073 = vmatprep.subr.mxu0 0.0
    %1074 = vmatpush2.msra.mxu0 0.0
    %1075 = vmatprep.subr.mxu0 0.0
    %1076 = vmatpush2.msra.mxu0 0.0
    %1077 = vmatprep.subr.mxu0 0.0
    %1078 = vmatpush2.msra.mxu0 0.0
    %1079 = vmatprep.subr.mxu0 0.0
    %1080 = vmatpush2.msra.mxu0 0.0
    %1081 = vmatprep.subr.mxu0 0.0
    %1082 = vmatpush2.msra.mxu0 0.0
    %1083 = vmatprep.subr.mxu0 0.0
    %1084 = vmatpush2.msra.mxu0 0.0
    %1085 = vmatprep.subr.mxu0 0.0
    %1086 = vmatpush2.msra.mxu0 0.0
    %1087 = vmatprep.subr.mxu0 0.0
    %1088 = vmatpush2.msra.mxu0 0.0
    %1089 = vmatprep.subr.mxu0 0.0
    %1090 = vmatpush2.msra.mxu0 0.0
    %1091 = vmatprep.subr.mxu0 0.0
    %1092 = vmatpush2.msra.mxu0 0.0
    %1093 = vmatprep.subr.mxu0 0.0
    %1094 = vmatpush2.msra.mxu0 0.0
    %1095 = vmatprep.subr.mxu0 0.0
    %1096 = vmatpush2.msra.mxu0 0.0
    %1097 = vmatprep.subr.mxu0 0.0
    %1098 = vmatpush2.msra.mxu0 0.0
    %1099 = vmatprep.mubr.f32.mxu0 0.0
    %1100 = vmatmul.mubr.f32.gmra.mxu0 %v1033
    %v1101 = vpop.f32.mrf.mxu0
    %v1102 = vadd.f32 %v1008, %v1101
    %v1103 = vpop.f32.mrf.mxu0
    %1104 = vdwg.mxu0
    %v1105 = vadd.f32 %v1102, 3.0
    %v1106 = vmax.f32 %v1105, 0.0
    %v1107 = vmin.f32 %v1106, 6.0
    %v1108 = vmul.f32 %v1102, %v1107
    %v1109 = vmul.f32 %v1108, 0.16666667
    %v1110 = vld [vmem:[%s10] sm:$0xff]
    %v1111 = vld [vmem:[%s10 + $0x8] sm:$0xff]
    %v1112 = vld [vmem:[%s10 + $0x10] sm:$0xff]
    %v1113 = vld [vmem:[%s10 + $0x18] sm:$0xff]
    %v1114 = vld [vmem:[%s11] sm:$0x1]
    %v1116 = vlaneseq
    %v1117 = vshrl.u32 %v1116, 7
    %v1118 = vsub.s32 0, %v1117
    %v1119 = vrot.slane %v1114, %v1118
    %vm1121 = vcmask 261120
    %v1123 = vsel %vm1121, %v1109, 0
    %1125 = vmatprep.subr.mxu0 0.0
    %1126 = vmatpush1.msra.mxu0 0.0
    %1127 = vmatprep.subr.mxu0 0.0
    %1128 = vmatpush1.msra.mxu0 0.0
    %1129 = vmatprep.subr.mxu0 0.0
    %1130 = vmatpush1.msra.mxu0 0.0
    %1131 = vmatprep.subr.mxu0 0.0
    %1132 = vmatpush1.msra.mxu0 0.0
    %1133 = vmatprep.subr.mxu0 0.0
    %1134 = vmatpush1.msra.mxu0 0.0
    %1135 = vmatprep.subr.mxu0 0.0
    %1136 = vmatpush1.msra.mxu0 0.0
    %1137 = vmatprep.subr.mxu0 0.0
    %1138 = vmatpush1.msra.mxu0 0.0
    %1139 = vmatprep.subr.mxu0 0.0
    %1140 = vmatpush1.msra.mxu0 0.0
    %1141 = vmatprep.subr.mxu0 0.0
    %1142 = vmatpush1.msra.mxu0 0.0
    %1143 = vmatprep.subr.mxu0 0.0
    %1144 = vmatpush1.msra.mxu0 0.0
    %1145 = vmatprep.subr.mxu0 0.0
    %1146 = vmatpush1.msra.mxu0 0.0
    %1147 = vmatprep.subr.mxu0 0.0
    %1148 = vmatpush1.msra.mxu0 0.0
    %1149 = vmatprep.subr.mxu0 0.0
    %1150 = vmatpush1.msra.mxu0 %v1113
    %1151 = vmatprep.subr.mxu0 0.0
    %1152 = vmatpush1.msra.mxu0 %v1112
    %1153 = vmatprep.subr.mxu0 0.0
    %1154 = vmatpush1.msra.mxu0 %v1111
    %1155 = vmatprep.subr.mxu0 0.0
    %1156 = vmatpush1.msra.mxu0 %v1110
    %1157 = vmatprep.subr.mxu0 0.0
    %1158 = vmatpush2.msra.mxu0 0.0
    %1159 = vmatprep.subr.mxu0 0.0
    %1160 = vmatpush2.msra.mxu0 0.0
    %1161 = vmatprep.subr.mxu0 0.0
    %1162 = vmatpush2.msra.mxu0 0.0
    %1163 = vmatprep.subr.mxu0 0.0
    %1164 = vmatpush2.msra.mxu0 0.0
    %1165 = vmatprep.subr.mxu0 0.0
    %1166 = vmatpush2.msra.mxu0 0.0
    %1167 = vmatprep.subr.mxu0 0.0
    %1168 = vmatpush2.msra.mxu0 0.0
    %1169 = vmatprep.subr.mxu0 0.0
    %1170 = vmatpush2.msra.mxu0 0.0
    %1171 = vmatprep.subr.mxu0 0.0
    %1172 = vmatpush2.msra.mxu0 0.0
    %1173 = vmatprep.subr.mxu0 0.0
    %1174 = vmatpush2.msra.mxu0 0.0
    %1175 = vmatprep.subr.mxu0 0.0
    %1176 = vmatpush2.msra.mxu0 0.0
    %1177 = vmatprep.subr.mxu0 0.0
    %1178 = vmatpush2.msra.mxu0 0.0
    %1179 = vmatprep.subr.mxu0 0.0
    %1180 = vmatpush2.msra.mxu0 0.0
    %1181 = vmatprep.subr.mxu0 0.0
    %1182 = vmatpush2.msra.mxu0 0.0
    %1183 = vmatprep.subr.mxu0 0.0
    %1184 = vmatpush2.msra.mxu0 0.0
    %1185 = vmatprep.subr.mxu0 0.0
    %1186 = vmatpush2.msra.mxu0 0.0
    %1187 = vmatprep.subr.mxu0 0.0
    %1188 = vmatpush2.msra.mxu0 0.0
    %1189 = vmatprep.mubr.f32.mxu0 0.0
    %1190 = vmatmul.mubr.f32.gmra.mxu0 %v1123
    %v1191 = vpop.f32.mrf.mxu0
    %v1192 = vadd.f32 %v1119, %v1191
    %v1193 = vpop.f32.mrf.mxu0
    %1194 = vdwg.mxu0
    %vm1195 = vcmask 74752
    %1196 = vst.msk [vmem:[#allocation13] sm:$0x3] %vm1195, %v1192
    // Predicated region
    $region74: #{tpu_custom_call.1} parent=1 // pred_check
      _
    $region75: #{tpu_custom_call.1} parent=1 // pred_check_branch
      %1198 = sbr.rel (0) target = $region77
    $region76: #{tpu_custom_call.1} parent=1 // pred_region
      %s1200 = ssub.s32 32, 32
      %1201 = vsyncadd [#allocation4], %s1200
      %s1203 = sshll.u32 [#allocation13], 4
      %s1204 = int_to_ptr.vmem [resolvable:$true] %s1203
      %1206 = dma.vmem_to_hbm [thread:$0]  %s1204, 32, %s12, [#allocation4]
    $region77: #{tpu_custom_call.1} parent=1 // pred_fallthru
      _
    // Predicated region
    $region78: #{tpu_custom_call.1} parent=1 // pred_check
      _
    $region79: #{tpu_custom_call.1} parent=1 // pred_check_branch
      %1208 = sbr.rel (0) target = $region81
    $region80: #{tpu_custom_call.1} parent=1 // pred_region
      %1209 = dma.done [#allocation4], 32
    $region81: #{tpu_custom_call.1} parent=1 // pred_fallthru
      _
    %1210 = vsyncpa [#allocation3], 1
    %1211 = vsyncpa [#allocation6], 1
    %1212 = vsyncpa [#allocation9], 1
    %1213 = vsyncpa [#allocation12], 1
    %1214 = vsyncpa [#allocation4], 1

</llo_original>
